<compile_context>
chip_gen: v7x
topology: tpu7x:2x2x1
jax: 0.10.0
libtpu: 0.0.40
codegen_flags: <defaults>
</compile_context>

<pallas_src>
import math

import jax
import jax.numpy as jnp
from jax.experimental import pallas as pl
from jax.experimental.pallas import tpu as pltpu

WS = 11          # window_size
SIGMA = 1.5
C1 = 0.01 ** 2
C2 = 0.03 ** 2


def _gauss_taps_py(window_size=WS, sigma=SIGMA):
    """1-D Gaussian taps as plain Python floats (same as gaussian())."""
    g = [math.exp(-((x - window_size // 2) ** 2) / (2.0 * sigma ** 2))
         for x in range(window_size)]
    s = sum(g)
    return tuple(v / s for v in g)


_G = _gauss_taps_py()   # 11 compile-time constants, folded into vmul immediates


def _ssim_kernel(img1p_ref, img2p_ref, out_ref):
    # img1p_ref / img2p_ref: (1, Hp, Wp) f32 VMEM -- one zero-padded channel.
    # out_ref: (1, 8, 128) f32 VMEM -- per-channel mean SSIM, broadcast.
    _, Hp, Wp = img1p_ref.shape
    H = Hp - (WS - 1)
    W = Wp - (WS - 1)

    a = img1p_ref[...]
    b = img2p_ref[...]
    # Hoisted products (they commute with the window shifts).
    aa = a * a
    bb = b * b
    ab = a * b

    def hconv(x):                       # 11 taps along the lane (W) axis
        acc = _G[0] * x[:, :, 0:W]
        for kx in range(1, WS):
            acc = acc + _G[kx] * x[:, :, kx:kx + W]
        return acc                      # (1, Hp, W)

    def vconv(x):                       # 11 taps along the sublane (H) axis
        acc = _G[0] * x[:, 0:H, :]
        for ky in range(1, WS):
            acc = acc + _G[ky] * x[:, ky:ky + H, :]
        return acc                      # (1, H, W)

    mu1 = vconv(hconv(a))
    mu2 = vconv(hconv(b))
    s11 = vconv(hconv(aa))
    s22 = vconv(hconv(bb))
    s12 = vconv(hconv(ab))

    mu1_sq = mu1 * mu1
    mu2_sq = mu2 * mu2
    mu1_mu2 = mu1 * mu2
    sigma1_sq = s11 - mu1_sq
    sigma2_sq = s22 - mu2_sq
    sigma12 = s12 - mu1_mu2

    num = (2.0 * mu1_mu2 + C1) * (2.0 * sigma12 + C2)
    den = (mu1_sq + mu2_sq + C1) * (sigma1_sq + sigma2_sq + C2)
    # approx=False keeps the 1e-5 tolerance vs the conv reference.
    ssim_map = num * pl.reciprocal(den, approx=False)

    # Per-channel mean; wrapper averages across channels (two-level reduction).
    chan_mean = jnp.sum(ssim_map) * (1.0 / float(H * W))
    out_ref[...] = chan_mean * jnp.ones(out_ref.shape, jnp.float32)
    # TODO(synk): size_average=False (per-sample mean over C,H,W) not emitted;
    # module default is True.


def ssim_pallas(img1, img2):
    """img1, img2: (N, C, H, W) float32, NCHW as in PyTorch. Returns scalar."""
    N, C, H, W = img1.shape
    NC = N * C
    pad = WS // 2
    Hp, Wp = H + 2 * pad, W + 2 * pad

    i1p = jnp.pad(img1.astype(jnp.float32).reshape(NC, H, W),
                  ((0, 0), (pad, pad), (pad, pad)))
    i2p = jnp.pad(img2.astype(jnp.float32).reshape(NC, H, W),
                  ((0, 0), (pad, pad), (pad, pad)))
    # TODO(synk): fold the 5-pixel halo into the tile DMA instead of a
    # wrapper-side jnp.pad to avoid one extra HBM round-trip of the inputs.

    # Per-channel footprint: 2 double-buffered input blocks + ~16 working maps.
    tile_bytes = (2 * 2 + 16) * Hp * Wp * 4 + 2 * (8 * 128 * 4)
    vmem_limit = int(min(64 << 20, max(16 << 20, tile_bytes + (2 << 20))))

    out = pl.pallas_call(
        _ssim_kernel,
        out_shape=jax.ShapeDtypeStruct((NC, 8, 128), jnp.float32),
        grid_spec=pltpu.PrefetchScalarGridSpec(
            num_scalar_prefetch=0,
            grid=(NC,),
            in_specs=[
                pl.BlockSpec((1, Hp, Wp), lambda i: (i, 0, 0)),
                pl.BlockSpec((1, Hp, Wp), lambda i: (i, 0, 0)),
            ],
            out_specs=pl.BlockSpec((1, 8, 128), lambda i: (i, 0, 0)),
        ),
        compiler_params=pltpu.CompilerParams(
            dimension_semantics=("parallel",),   # v7x: 2 TCs split the channels
            vmem_limit_bytes=vmem_limit,
        ),
    )(i1p, i2p)

    # size_average=True: all channels have the same element count, so the mean
    # of per-channel means equals the global mean.
    return jnp.mean(out[:, 0, 0])


def _ssim_reference(img1, img2):
    """Plain-JAX reference mirroring the PyTorch _ssim()."""
    N, C, H, W = img1.shape
    g = jnp.asarray(_G, dtype=jnp.float32)
    w2d = jnp.outer(g, g)
    kernel = jnp.broadcast_to(w2d, (C, 1, WS, WS)).astype(jnp.float32)

    def conv(x):
        return jax.lax.conv_general_dilated(
            x, kernel, window_strides=(1, 1),
            padding=[(WS // 2, WS // 2)] * 2,
            dimension_numbers=("NCHW", "OIHW", "NCHW"),
            feature_group_count=C)

    mu1, mu2 = conv(img1), conv(img2)
    mu1_sq, mu2_sq, mu1_mu2 = mu1 * mu1, mu2 * mu2, mu1 * mu2
    sigma1_sq = conv(img1 * img1) - mu1_sq
    sigma2_sq = conv(img2 * img2) - mu2_sq
    sigma12 = conv(img1 * img2) - mu1_mu2
    ssim_map = ((2 * mu1_mu2 + C1) * (2 * sigma12 + C2)
                / ((mu1_sq + mu2_sq + C1) * (sigma1_sq + sigma2_sq + C2)))
    return jnp.mean(ssim_map)


if __name__ == "__main__":
    key = jax.random.PRNGKey(0)
    k1, k2 = jax.random.split(key)
    # Module's window is built with channel=1, so C must be 1 (as in PyTorch).
    img1 = jax.random.uniform(k1, (2, 1, 16, 16), dtype=jnp.float32)
    img2 = jax.random.uniform(k2, (2, 1, 16, 16), dtype=jnp.float32)

    result = jax.block_until_ready(ssim_pallas(img1, img2))
    ref = jax.block_until_ready(_ssim_reference(img1, img2))
    assert jnp.allclose(result, ref, atol=1e-5, rtol=1e-5), (result, ref)

    print("KERNEL_OK")
</pallas_src>

<mosaic_0001>
module attributes {stable_mosaic.version = 11 : i64} {
  func.func @_ssim_kernel(%arg0: i32, %arg1: memref<1x26x26xf32, #tpu.memory_space<vmem>>, %arg2: memref<1x26x26xf32, #tpu.memory_space<vmem>>, %arg3: memref<1x8x128xf32, #tpu.memory_space<vmem>>) attributes {dimension_semantics = [#tpu.dimension_semantics<parallel>], iteration_bounds = array<i64: 2>, scalar_prefetch = 0 : i64, scratch_operands = 0 : i64, tpu.core_type = #tpu.core_type<tc>, window_params = [{transform_indices = @transform_0, window_bounds = array<i64: 1, 26, 26>}, {transform_indices = @transform_1, window_bounds = array<i64: 1, 26, 26>}, {transform_indices = @transform_2, window_bounds = array<i64: 1, 8, 128>}]} {
    %c0 = arith.constant 0 : index
    %c0_0 = arith.constant 0 : index
    %c0_1 = arith.constant 0 : index
    %0 = vector.load %arg1[%c0, %c0_0, %c0_1] : memref<1x26x26xf32, #tpu.memory_space<vmem>>, vector<1x26x26xf32>
    %c0_2 = arith.constant 0 : index
    %c0_3 = arith.constant 0 : index
    %c0_4 = arith.constant 0 : index
    %1 = vector.load %arg2[%c0_2, %c0_3, %c0_4] : memref<1x26x26xf32, #tpu.memory_space<vmem>>, vector<1x26x26xf32>
    %2 = arith.mulf %0, %0 : vector<1x26x26xf32>
    %3 = arith.mulf %1, %1 : vector<1x26x26xf32>
    %4 = arith.mulf %0, %1 : vector<1x26x26xf32>
    %5 = vector.extract_strided_slice %0 {offsets = [0, 0, 0], sizes = [1, 26, 16], strides = [1, 1, 1]} : vector<1x26x26xf32> to vector<1x26x16xf32>
    %cst = arith.constant 0.00102838012 : f32
    %6 = vector.broadcast %cst : f32 to vector<1x26x16xf32>
    %7 = arith.mulf %6, %5 : vector<1x26x16xf32>
    %8 = vector.extract_strided_slice %0 {offsets = [0, 0, 1], sizes = [1, 26, 16], strides = [1, 1, 1]} : vector<1x26x26xf32> to vector<1x26x16xf32>
    %cst_5 = arith.constant 0.00759875821 : f32
    %9 = vector.broadcast %cst_5 : f32 to vector<1x26x16xf32>
    %10 = arith.mulf %9, %8 : vector<1x26x16xf32>
    %11 = arith.addf %7, %10 : vector<1x26x16xf32>
    %12 = vector.extract_strided_slice %0 {offsets = [0, 0, 2], sizes = [1, 26, 16], strides = [1, 1, 1]} : vector<1x26x26xf32> to vector<1x26x16xf32>
    %cst_6 = arith.constant 0.0360007733 : f32
    %13 = vector.broadcast %cst_6 : f32 to vector<1x26x16xf32>
    %14 = arith.mulf %13, %12 : vector<1x26x16xf32>
    %15 = arith.addf %11, %14 : vector<1x26x16xf32>
    %16 = vector.extract_strided_slice %0 {offsets = [0, 0, 3], sizes = [1, 26, 16], strides = [1, 1, 1]} : vector<1x26x26xf32> to vector<1x26x16xf32>
    %cst_7 = arith.constant 0.109360687 : f32
    %17 = vector.broadcast %cst_7 : f32 to vector<1x26x16xf32>
    %18 = arith.mulf %17, %16 : vector<1x26x16xf32>
    %19 = arith.addf %15, %18 : vector<1x26x16xf32>
    %20 = vector.extract_strided_slice %0 {offsets = [0, 0, 4], sizes = [1, 26, 16], strides = [1, 1, 1]} : vector<1x26x26xf32> to vector<1x26x16xf32>
    %cst_8 = arith.constant 0.213005543 : f32
    %21 = vector.broadcast %cst_8 : f32 to vector<1x26x16xf32>
    %22 = arith.mulf %21, %20 : vector<1x26x16xf32>
    %23 = arith.addf %19, %22 : vector<1x26x16xf32>
    %24 = vector.extract_strided_slice %0 {offsets = [0, 0, 5], sizes = [1, 26, 16], strides = [1, 1, 1]} : vector<1x26x26xf32> to vector<1x26x16xf32>
    %cst_9 = arith.constant 0.266011715 : f32
    %25 = vector.broadcast %cst_9 : f32 to vector<1x26x16xf32>
    %26 = arith.mulf %25, %24 : vector<1x26x16xf32>
    %27 = arith.addf %23, %26 : vector<1x26x16xf32>
    %28 = vector.extract_strided_slice %0 {offsets = [0, 0, 6], sizes = [1, 26, 16], strides = [1, 1, 1]} : vector<1x26x26xf32> to vector<1x26x16xf32>
    %cst_10 = arith.constant 0.213005543 : f32
    %29 = vector.broadcast %cst_10 : f32 to vector<1x26x16xf32>
    %30 = arith.mulf %29, %28 : vector<1x26x16xf32>
    %31 = arith.addf %27, %30 : vector<1x26x16xf32>
    %32 = vector.extract_strided_slice %0 {offsets = [0, 0, 7], sizes = [1, 26, 16], strides = [1, 1, 1]} : vector<1x26x26xf32> to vector<1x26x16xf32>
    %cst_11 = arith.constant 0.109360687 : f32
    %33 = vector.broadcast %cst_11 : f32 to vector<1x26x16xf32>
    %34 = arith.mulf %33, %32 : vector<1x26x16xf32>
    %35 = arith.addf %31, %34 : vector<1x26x16xf32>
    %36 = vector.extract_strided_slice %0 {offsets = [0, 0, 8], sizes = [1, 26, 16], strides = [1, 1, 1]} : vector<1x26x26xf32> to vector<1x26x16xf32>
    %cst_12 = arith.constant 0.0360007733 : f32
    %37 = vector.broadcast %cst_12 : f32 to vector<1x26x16xf32>
    %38 = arith.mulf %37, %36 : vector<1x26x16xf32>
    %39 = arith.addf %35, %38 : vector<1x26x16xf32>
    %40 = vector.extract_strided_slice %0 {offsets = [0, 0, 9], sizes = [1, 26, 16], strides = [1, 1, 1]} : vector<1x26x26xf32> to vector<1x26x16xf32>
    %cst_13 = arith.constant 0.00759875821 : f32
    %41 = vector.broadcast %cst_13 : f32 to vector<1x26x16xf32>
    %42 = arith.mulf %41, %40 : vector<1x26x16xf32>
    %43 = arith.addf %39, %42 : vector<1x26x16xf32>
    %44 = vector.extract_strided_slice %0 {offsets = [0, 0, 10], sizes = [1, 26, 16], strides = [1, 1, 1]} : vector<1x26x26xf32> to vector<1x26x16xf32>
    %cst_14 = arith.constant 0.00102838012 : f32
    %45 = vector.broadcast %cst_14 : f32 to vector<1x26x16xf32>
    %46 = arith.mulf %45, %44 : vector<1x26x16xf32>
    %47 = arith.addf %43, %46 : vector<1x26x16xf32>
    %48 = vector.extract_strided_slice %47 {offsets = [0, 0, 0], sizes = [1, 16, 16], strides = [1, 1, 1]} : vector<1x26x16xf32> to vector<1x16x16xf32>
    %cst_15 = arith.constant 0.00102838012 : f32
    %49 = vector.broadcast %cst_15 : f32 to vector<1x16x16xf32>
    %50 = arith.mulf %49, %48 : vector<1x16x16xf32>
    %51 = vector.extract_strided_slice %47 {offsets = [0, 1, 0], sizes = [1, 16, 16], strides = [1, 1, 1]} : vector<1x26x16xf32> to vector<1x16x16xf32>
    %cst_16 = arith.constant 0.00759875821 : f32
    %52 = vector.broadcast %cst_16 : f32 to vector<1x16x16xf32>
    %53 = arith.mulf %52, %51 : vector<1x16x16xf32>
    %54 = arith.addf %50, %53 : vector<1x16x16xf32>
    %55 = vector.extract_strided_slice %47 {offsets = [0, 2, 0], sizes = [1, 16, 16], strides = [1, 1, 1]} : vector<1x26x16xf32> to vector<1x16x16xf32>
    %cst_17 = arith.constant 0.0360007733 : f32
    %56 = vector.broadcast %cst_17 : f32 to vector<1x16x16xf32>
    %57 = arith.mulf %56, %55 : vector<1x16x16xf32>
    %58 = arith.addf %54, %57 : vector<1x16x16xf32>
    %59 = vector.extract_strided_slice %47 {offsets = [0, 3, 0], sizes = [1, 16, 16], strides = [1, 1, 1]} : vector<1x26x16xf32> to vector<1x16x16xf32>
    %cst_18 = arith.constant 0.109360687 : f32
    %60 = vector.broadcast %cst_18 : f32 to vector<1x16x16xf32>
    %61 = arith.mulf %60, %59 : vector<1x16x16xf32>
    %62 = arith.addf %58, %61 : vector<1x16x16xf32>
    %63 = vector.extract_strided_slice %47 {offsets = [0, 4, 0], sizes = [1, 16, 16], strides = [1, 1, 1]} : vector<1x26x16xf32> to vector<1x16x16xf32>
    %cst_19 = arith.constant 0.213005543 : f32
    %64 = vector.broadcast %cst_19 : f32 to vector<1x16x16xf32>
    %65 = arith.mulf %64, %63 : vector<1x16x16xf32>
    %66 = arith.addf %62, %65 : vector<1x16x16xf32>
    %67 = vector.extract_strided_slice %47 {offsets = [0, 5, 0], sizes = [1, 16, 16], strides = [1, 1, 1]} : vector<1x26x16xf32> to vector<1x16x16xf32>
    %cst_20 = arith.constant 0.266011715 : f32
    %68 = vector.broadcast %cst_20 : f32 to vector<1x16x16xf32>
    %69 = arith.mulf %68, %67 : vector<1x16x16xf32>
    %70 = arith.addf %66, %69 : vector<1x16x16xf32>
    %71 = vector.extract_strided_slice %47 {offsets = [0, 6, 0], sizes = [1, 16, 16], strides = [1, 1, 1]} : vector<1x26x16xf32> to vector<1x16x16xf32>
    %cst_21 = arith.constant 0.213005543 : f32
    %72 = vector.broadcast %cst_21 : f32 to vector<1x16x16xf32>
    %73 = arith.mulf %72, %71 : vector<1x16x16xf32>
    %74 = arith.addf %70, %73 : vector<1x16x16xf32>
    %75 = vector.extract_strided_slice %47 {offsets = [0, 7, 0], sizes = [1, 16, 16], strides = [1, 1, 1]} : vector<1x26x16xf32> to vector<1x16x16xf32>
    %cst_22 = arith.constant 0.109360687 : f32
    %76 = vector.broadcast %cst_22 : f32 to vector<1x16x16xf32>
    %77 = arith.mulf %76, %75 : vector<1x16x16xf32>
    %78 = arith.addf %74, %77 : vector<1x16x16xf32>
    %79 = vector.extract_strided_slice %47 {offsets = [0, 8, 0], sizes = [1, 16, 16], strides = [1, 1, 1]} : vector<1x26x16xf32> to vector<1x16x16xf32>
    %cst_23 = arith.constant 0.0360007733 : f32
    %80 = vector.broadcast %cst_23 : f32 to vector<1x16x16xf32>
    %81 = arith.mulf %80, %79 : vector<1x16x16xf32>
    %82 = arith.addf %78, %81 : vector<1x16x16xf32>
    %83 = vector.extract_strided_slice %47 {offsets = [0, 9, 0], sizes = [1, 16, 16], strides = [1, 1, 1]} : vector<1x26x16xf32> to vector<1x16x16xf32>
    %cst_24 = arith.constant 0.00759875821 : f32
    %84 = vector.broadcast %cst_24 : f32 to vector<1x16x16xf32>
    %85 = arith.mulf %84, %83 : vector<1x16x16xf32>
    %86 = arith.addf %82, %85 : vector<1x16x16xf32>
    %87 = vector.extract_strided_slice %47 {offsets = [0, 10, 0], sizes = [1, 16, 16], strides = [1, 1, 1]} : vector<1x26x16xf32> to vector<1x16x16xf32>
    %cst_25 = arith.constant 0.00102838012 : f32
    %88 = vector.broadcast %cst_25 : f32 to vector<1x16x16xf32>
    %89 = arith.mulf %88, %87 : vector<1x16x16xf32>
    %90 = arith.addf %86, %89 : vector<1x16x16xf32>
    %91 = vector.extract_strided_slice %1 {offsets = [0, 0, 0], sizes = [1, 26, 16], strides = [1, 1, 1]} : vector<1x26x26xf32> to vector<1x26x16xf32>
    %cst_26 = arith.constant 0.00102838012 : f32
    %92 = vector.broadcast %cst_26 : f32 to vector<1x26x16xf32>
    %93 = arith.mulf %92, %91 : vector<1x26x16xf32>
    %94 = vector.extract_strided_slice %1 {offsets = [0, 0, 1], sizes = [1, 26, 16], strides = [1, 1, 1]} : vector<1x26x26xf32> to vector<1x26x16xf32>
    %cst_27 = arith.constant 0.00759875821 : f32
    %95 = vector.broadcast %cst_27 : f32 to vector<1x26x16xf32>
    %96 = arith.mulf %95, %94 : vector<1x26x16xf32>
    %97 = arith.addf %93, %96 : vector<1x26x16xf32>
    %98 = vector.extract_strided_slice %1 {offsets = [0, 0, 2], sizes = [1, 26, 16], strides = [1, 1, 1]} : vector<1x26x26xf32> to vector<1x26x16xf32>
    %cst_28 = arith.constant 0.0360007733 : f32
    %99 = vector.broadcast %cst_28 : f32 to vector<1x26x16xf32>
    %100 = arith.mulf %99, %98 : vector<1x26x16xf32>
    %101 = arith.addf %97, %100 : vector<1x26x16xf32>
    %102 = vector.extract_strided_slice %1 {offsets = [0, 0, 3], sizes = [1, 26, 16], strides = [1, 1, 1]} : vector<1x26x26xf32> to vector<1x26x16xf32>
    %cst_29 = arith.constant 0.109360687 : f32
    %103 = vector.broadcast %cst_29 : f32 to vector<1x26x16xf32>
    %104 = arith.mulf %103, %102 : vector<1x26x16xf32>
    %105 = arith.addf %101, %104 : vector<1x26x16xf32>
    %106 = vector.extract_strided_slice %1 {offsets = [0, 0, 4], sizes = [1, 26, 16], strides = [1, 1, 1]} : vector<1x26x26xf32> to vector<1x26x16xf32>
    %cst_30 = arith.constant 0.213005543 : f32
    %107 = vector.broadcast %cst_30 : f32 to vector<1x26x16xf32>
    %108 = arith.mulf %107, %106 : vector<1x26x16xf32>
    %109 = arith.addf %105, %108 : vector<1x26x16xf32>
    %110 = vector.extract_strided_slice %1 {offsets = [0, 0, 5], sizes = [1, 26, 16], strides = [1, 1, 1]} : vector<1x26x26xf32> to vector<1x26x16xf32>
    %cst_31 = arith.constant 0.266011715 : f32
    %111 = vector.broadcast %cst_31 : f32 to vector<1x26x16xf32>
    %112 = arith.mulf %111, %110 : vector<1x26x16xf32>
    %113 = arith.addf %109, %112 : vector<1x26x16xf32>
    %114 = vector.extract_strided_slice %1 {offsets = [0, 0, 6], sizes = [1, 26, 16], strides = [1, 1, 1]} : vector<1x26x26xf32> to vector<1x26x16xf32>
    %cst_32 = arith.constant 0.213005543 : f32
    %115 = vector.broadcast %cst_32 : f32 to vector<1x26x16xf32>
    %116 = arith.mulf %115, %114 : vector<1x26x16xf32>
    %117 = arith.addf %113, %116 : vector<1x26x16xf32>
    %118 = vector.extract_strided_slice %1 {offsets = [0, 0, 7], sizes = [1, 26, 16], strides = [1, 1, 1]} : vector<1x26x26xf32> to vector<1x26x16xf32>
    %cst_33 = arith.constant 0.109360687 : f32
    %119 = vector.broadcast %cst_33 : f32 to vector<1x26x16xf32>
    %120 = arith.mulf %119, %118 : vector<1x26x16xf32>
    %121 = arith.addf %117, %120 : vector<1x26x16xf32>
    %122 = vector.extract_strided_slice %1 {offsets = [0, 0, 8], sizes = [1, 26, 16], strides = [1, 1, 1]} : vector<1x26x26xf32> to vector<1x26x16xf32>
    %cst_34 = arith.constant 0.0360007733 : f32
    %123 = vector.broadcast %cst_34 : f32 to vector<1x26x16xf32>
    %124 = arith.mulf %123, %122 : vector<1x26x16xf32>
    %125 = arith.addf %121, %124 : vector<1x26x16xf32>
    %126 = vector.extract_strided_slice %1 {offsets = [0, 0, 9], sizes = [1, 26, 16], strides = [1, 1, 1]} : vector<1x26x26xf32> to vector<1x26x16xf32>
    %cst_35 = arith.constant 0.00759875821 : f32
    %127 = vector.broadcast %cst_35 : f32 to vector<1x26x16xf32>
    %128 = arith.mulf %127, %126 : vector<1x26x16xf32>
    %129 = arith.addf %125, %128 : vector<1x26x16xf32>
    %130 = vector.extract_strided_slice %1 {offsets = [0, 0, 10], sizes = [1, 26, 16], strides = [1, 1, 1]} : vector<1x26x26xf32> to vector<1x26x16xf32>
    %cst_36 = arith.constant 0.00102838012 : f32
    %131 = vector.broadcast %cst_36 : f32 to vector<1x26x16xf32>
    %132 = arith.mulf %131, %130 : vector<1x26x16xf32>
    %133 = arith.addf %129, %132 : vector<1x26x16xf32>
    %134 = vector.extract_strided_slice %133 {offsets = [0, 0, 0], sizes = [1, 16, 16], strides = [1, 1, 1]} : vector<1x26x16xf32> to vector<1x16x16xf32>
    %cst_37 = arith.constant 0.00102838012 : f32
    %135 = vector.broadcast %cst_37 : f32 to vector<1x16x16xf32>
    %136 = arith.mulf %135, %134 : vector<1x16x16xf32>
    %137 = vector.extract_strided_slice %133 {offsets = [0, 1, 0], sizes = [1, 16, 16], strides = [1, 1, 1]} : vector<1x26x16xf32> to vector<1x16x16xf32>
    %cst_38 = arith.constant 0.00759875821 : f32
    %138 = vector.broadcast %cst_38 : f32 to vector<1x16x16xf32>
    %139 = arith.mulf %138, %137 : vector<1x16x16xf32>
    %140 = arith.addf %136, %139 : vector<1x16x16xf32>
    %141 = vector.extract_strided_slice %133 {offsets = [0, 2, 0], sizes = [1, 16, 16], strides = [1, 1, 1]} : vector<1x26x16xf32> to vector<1x16x16xf32>
    %cst_39 = arith.constant 0.0360007733 : f32
    %142 = vector.broadcast %cst_39 : f32 to vector<1x16x16xf32>
    %143 = arith.mulf %142, %141 : vector<1x16x16xf32>
    %144 = arith.addf %140, %143 : vector<1x16x16xf32>
    %145 = vector.extract_strided_slice %133 {offsets = [0, 3, 0], sizes = [1, 16, 16], strides = [1, 1, 1]} : vector<1x26x16xf32> to vector<1x16x16xf32>
    %cst_40 = arith.constant 0.109360687 : f32
    %146 = vector.broadcast %cst_40 : f32 to vector<1x16x16xf32>
    %147 = arith.mulf %146, %145 : vector<1x16x16xf32>
    %148 = arith.addf %144, %147 : vector<1x16x16xf32>
    %149 = vector.extract_strided_slice %133 {offsets = [0, 4, 0], sizes = [1, 16, 16], strides = [1, 1, 1]} : vector<1x26x16xf32> to vector<1x16x16xf32>
    %cst_41 = arith.constant 0.213005543 : f32
    %150 = vector.broadcast %cst_41 : f32 to vector<1x16x16xf32>
    %151 = arith.mulf %150, %149 : vector<1x16x16xf32>
    %152 = arith.addf %148, %151 : vector<1x16x16xf32>
    %153 = vector.extract_strided_slice %133 {offsets = [0, 5, 0], sizes = [1, 16, 16], strides = [1, 1, 1]} : vector<1x26x16xf32> to vector<1x16x16xf32>
    %cst_42 = arith.constant 0.266011715 : f32
    %154 = vector.broadcast %cst_42 : f32 to vector<1x16x16xf32>
    %155 = arith.mulf %154, %153 : vector<1x16x16xf32>
    %156 = arith.addf %152, %155 : vector<1x16x16xf32>
    %157 = vector.extract_strided_slice %133 {offsets = [0, 6, 0], sizes = [1, 16, 16], strides = [1, 1, 1]} : vector<1x26x16xf32> to vector<1x16x16xf32>
    %cst_43 = arith.constant 0.213005543 : f32
    %158 = vector.broadcast %cst_43 : f32 to vector<1x16x16xf32>
    %159 = arith.mulf %158, %157 : vector<1x16x16xf32>
    %160 = arith.addf %156, %159 : vector<1x16x16xf32>
    %161 = vector.extract_strided_slice %133 {offsets = [0, 7, 0], sizes = [1, 16, 16], strides = [1, 1, 1]} : vector<1x26x16xf32> to vector<1x16x16xf32>
    %cst_44 = arith.constant 0.109360687 : f32
    %162 = vector.broadcast %cst_44 : f32 to vector<1x16x16xf32>
    %163 = arith.mulf %162, %161 : vector<1x16x16xf32>
    %164 = arith.addf %160, %163 : vector<1x16x16xf32>
    %165 = vector.extract_strided_slice %133 {offsets = [0, 8, 0], sizes = [1, 16, 16], strides = [1, 1, 1]} : vector<1x26x16xf32> to vector<1x16x16xf32>
    %cst_45 = arith.constant 0.0360007733 : f32
    %166 = vector.broadcast %cst_45 : f32 to vector<1x16x16xf32>
    %167 = arith.mulf %166, %165 : vector<1x16x16xf32>
    %168 = arith.addf %164, %167 : vector<1x16x16xf32>
    %169 = vector.extract_strided_slice %133 {offsets = [0, 9, 0], sizes = [1, 16, 16], strides = [1, 1, 1]} : vector<1x26x16xf32> to vector<1x16x16xf32>
    %cst_46 = arith.constant 0.00759875821 : f32
    %170 = vector.broadcast %cst_46 : f32 to vector<1x16x16xf32>
    %171 = arith.mulf %170, %169 : vector<1x16x16xf32>
    %172 = arith.addf %168, %171 : vector<1x16x16xf32>
    %173 = vector.extract_strided_slice %133 {offsets = [0, 10, 0], sizes = [1, 16, 16], strides = [1, 1, 1]} : vector<1x26x16xf32> to vector<1x16x16xf32>
    %cst_47 = arith.constant 0.00102838012 : f32
    %174 = vector.broadcast %cst_47 : f32 to vector<1x16x16xf32>
    %175 = arith.mulf %174, %173 : vector<1x16x16xf32>
    %176 = arith.addf %172, %175 : vector<1x16x16xf32>
    %177 = vector.extract_strided_slice %2 {offsets = [0, 0, 0], sizes = [1, 26, 16], strides = [1, 1, 1]} : vector<1x26x26xf32> to vector<1x26x16xf32>
    %cst_48 = arith.constant 0.00102838012 : f32
    %178 = vector.broadcast %cst_48 : f32 to vector<1x26x16xf32>
    %179 = arith.mulf %178, %177 : vector<1x26x16xf32>
    %180 = vector.extract_strided_slice %2 {offsets = [0, 0, 1], sizes = [1, 26, 16], strides = [1, 1, 1]} : vector<1x26x26xf32> to vector<1x26x16xf32>
    %cst_49 = arith.constant 0.00759875821 : f32
    %181 = vector.broadcast %cst_49 : f32 to vector<1x26x16xf32>
    %182 = arith.mulf %181, %180 : vector<1x26x16xf32>
    %183 = arith.addf %179, %182 : vector<1x26x16xf32>
    %184 = vector.extract_strided_slice %2 {offsets = [0, 0, 2], sizes = [1, 26, 16], strides = [1, 1, 1]} : vector<1x26x26xf32> to vector<1x26x16xf32>
    %cst_50 = arith.constant 0.0360007733 : f32
    %185 = vector.broadcast %cst_50 : f32 to vector<1x26x16xf32>
    %186 = arith.mulf %185, %184 : vector<1x26x16xf32>
    %187 = arith.addf %183, %186 : vector<1x26x16xf32>
    %188 = vector.extract_strided_slice %2 {offsets = [0, 0, 3], sizes = [1, 26, 16], strides = [1, 1, 1]} : vector<1x26x26xf32> to vector<1x26x16xf32>
    %cst_51 = arith.constant 0.109360687 : f32
    %189 = vector.broadcast %cst_51 : f32 to vector<1x26x16xf32>
    %190 = arith.mulf %189, %188 : vector<1x26x16xf32>
    %191 = arith.addf %187, %190 : vector<1x26x16xf32>
    %192 = vector.extract_strided_slice %2 {offsets = [0, 0, 4], sizes = [1, 26, 16], strides = [1, 1, 1]} : vector<1x26x26xf32> to vector<1x26x16xf32>
    %cst_52 = arith.constant 0.213005543 : f32
    %193 = vector.broadcast %cst_52 : f32 to vector<1x26x16xf32>
    %194 = arith.mulf %193, %192 : vector<1x26x16xf32>
    %195 = arith.addf %191, %194 : vector<1x26x16xf32>
    %196 = vector.extract_strided_slice %2 {offsets = [0, 0, 5], sizes = [1, 26, 16], strides = [1, 1, 1]} : vector<1x26x26xf32> to vector<1x26x16xf32>
    %cst_53 = arith.constant 0.266011715 : f32
    %197 = vector.broadcast %cst_53 : f32 to vector<1x26x16xf32>
    %198 = arith.mulf %197, %196 : vector<1x26x16xf32>
    %199 = arith.addf %195, %198 : vector<1x26x16xf32>
    %200 = vector.extract_strided_slice %2 {offsets = [0, 0, 6], sizes = [1, 26, 16], strides = [1, 1, 1]} : vector<1x26x26xf32> to vector<1x26x16xf32>
    %cst_54 = arith.constant 0.213005543 : f32
    %201 = vector.broadcast %cst_54 : f32 to vector<1x26x16xf32>
    %202 = arith.mulf %201, %200 : vector<1x26x16xf32>
    %203 = arith.addf %199, %202 : vector<1x26x16xf32>
    %204 = vector.extract_strided_slice %2 {offsets = [0, 0, 7], sizes = [1, 26, 16], strides = [1, 1, 1]} : vector<1x26x26xf32> to vector<1x26x16xf32>
    %cst_55 = arith.constant 0.109360687 : f32
    %205 = vector.broadcast %cst_55 : f32 to vector<1x26x16xf32>
    %206 = arith.mulf %205, %204 : vector<1x26x16xf32>
    %207 = arith.addf %203, %206 : vector<1x26x16xf32>
    %208 = vector.extract_strided_slice %2 {offsets = [0, 0, 8], sizes = [1, 26, 16], strides = [1, 1, 1]} : vector<1x26x26xf32> to vector<1x26x16xf32>
    %cst_56 = arith.constant 0.0360007733 : f32
    %209 = vector.broadcast %cst_56 : f32 to vector<1x26x16xf32>
    %210 = arith.mulf %209, %208 : vector<1x26x16xf32>
    %211 = arith.addf %207, %210 : vector<1x26x16xf32>
    %212 = vector.extract_strided_slice %2 {offsets = [0, 0, 9], sizes = [1, 26, 16], strides = [1, 1, 1]} : vector<1x26x26xf32> to vector<1x26x16xf32>
    %cst_57 = arith.constant 0.00759875821 : f32
    %213 = vector.broadcast %cst_57 : f32 to vector<1x26x16xf32>
    %214 = arith.mulf %213, %212 : vector<1x26x16xf32>
    %215 = arith.addf %211, %214 : vector<1x26x16xf32>
    %216 = vector.extract_strided_slice %2 {offsets = [0, 0, 10], sizes = [1, 26, 16], strides = [1, 1, 1]} : vector<1x26x26xf32> to vector<1x26x16xf32>
    %cst_58 = arith.constant 0.00102838012 : f32
    %217 = vector.broadcast %cst_58 : f32 to vector<1x26x16xf32>
    %218 = arith.mulf %217, %216 : vector<1x26x16xf32>
    %219 = arith.addf %215, %218 : vector<1x26x16xf32>
    %220 = vector.extract_strided_slice %219 {offsets = [0, 0, 0], sizes = [1, 16, 16], strides = [1, 1, 1]} : vector<1x26x16xf32> to vector<1x16x16xf32>
    %cst_59 = arith.constant 0.00102838012 : f32
    %221 = vector.broadcast %cst_59 : f32 to vector<1x16x16xf32>
    %222 = arith.mulf %221, %220 : vector<1x16x16xf32>
    %223 = vector.extract_strided_slice %219 {offsets = [0, 1, 0], sizes = [1, 16, 16], strides = [1, 1, 1]} : vector<1x26x16xf32> to vector<1x16x16xf32>
    %cst_60 = arith.constant 0.00759875821 : f32
    %224 = vector.broadcast %cst_60 : f32 to vector<1x16x16xf32>
    %225 = arith.mulf %224, %223 : vector<1x16x16xf32>
    %226 = arith.addf %222, %225 : vector<1x16x16xf32>
    %227 = vector.extract_strided_slice %219 {offsets = [0, 2, 0], sizes = [1, 16, 16], strides = [1, 1, 1]} : vector<1x26x16xf32> to vector<1x16x16xf32>
    %cst_61 = arith.constant 0.0360007733 : f32
    %228 = vector.broadcast %cst_61 : f32 to vector<1x16x16xf32>
    %229 = arith.mulf %228, %227 : vector<1x16x16xf32>
    %230 = arith.addf %226, %229 : vector<1x16x16xf32>
    %231 = vector.extract_strided_slice %219 {offsets = [0, 3, 0], sizes = [1, 16, 16], strides = [1, 1, 1]} : vector<1x26x16xf32> to vector<1x16x16xf32>
    %cst_62 = arith.constant 0.109360687 : f32
    %232 = vector.broadcast %cst_62 : f32 to vector<1x16x16xf32>
    %233 = arith.mulf %232, %231 : vector<1x16x16xf32>
    %234 = arith.addf %230, %233 : vector<1x16x16xf32>
    %235 = vector.extract_strided_slice %219 {offsets = [0, 4, 0], sizes = [1, 16, 16], strides = [1, 1, 1]} : vector<1x26x16xf32> to vector<1x16x16xf32>
    %cst_63 = arith.constant 0.213005543 : f32
    %236 = vector.broadcast %cst_63 : f32 to vector<1x16x16xf32>
    %237 = arith.mulf %236, %235 : vector<1x16x16xf32>
    %238 = arith.addf %234, %237 : vector<1x16x16xf32>
    %239 = vector.extract_strided_slice %219 {offsets = [0, 5, 0], sizes = [1, 16, 16], strides = [1, 1, 1]} : vector<1x26x16xf32> to vector<1x16x16xf32>
    %cst_64 = arith.constant 0.266011715 : f32
    %240 = vector.broadcast %cst_64 : f32 to vector<1x16x16xf32>
    %241 = arith.mulf %240, %239 : vector<1x16x16xf32>
    %242 = arith.addf %238, %241 : vector<1x16x16xf32>
    %243 = vector.extract_strided_slice %219 {offsets = [0, 6, 0], sizes = [1, 16, 16], strides = [1, 1, 1]} : vector<1x26x16xf32> to vector<1x16x16xf32>
    %cst_65 = arith.constant 0.213005543 : f32
    %244 = vector.broadcast %cst_65 : f32 to vector<1x16x16xf32>
    %245 = arith.mulf %244, %243 : vector<1x16x16xf32>
    %246 = arith.addf %242, %245 : vector<1x16x16xf32>
    %247 = vector.extract_strided_slice %219 {offsets = [0, 7, 0], sizes = [1, 16, 16], strides = [1, 1, 1]} : vector<1x26x16xf32> to vector<1x16x16xf32>
    %cst_66 = arith.constant 0.109360687 : f32
    %248 = vector.broadcast %cst_66 : f32 to vector<1x16x16xf32>
    %249 = arith.mulf %248, %247 : vector<1x16x16xf32>
    %250 = arith.addf %246, %249 : vector<1x16x16xf32>
    %251 = vector.extract_strided_slice %219 {offsets = [0, 8, 0], sizes = [1, 16, 16], strides = [1, 1, 1]} : vector<1x26x16xf32> to vector<1x16x16xf32>
    %cst_67 = arith.constant 0.0360007733 : f32
    %252 = vector.broadcast %cst_67 : f32 to vector<1x16x16xf32>
    %253 = arith.mulf %252, %251 : vector<1x16x16xf32>
    %254 = arith.addf %250, %253 : vector<1x16x16xf32>
    %255 = vector.extract_strided_slice %219 {offsets = [0, 9, 0], sizes = [1, 16, 16], strides = [1, 1, 1]} : vector<1x26x16xf32> to vector<1x16x16xf32>
    %cst_68 = arith.constant 0.00759875821 : f32
    %256 = vector.broadcast %cst_68 : f32 to vector<1x16x16xf32>
    %257 = arith.mulf %256, %255 : vector<1x16x16xf32>
    %258 = arith.addf %254, %257 : vector<1x16x16xf32>
    %259 = vector.extract_strided_slice %219 {offsets = [0, 10, 0], sizes = [1, 16, 16], strides = [1, 1, 1]} : vector<1x26x16xf32> to vector<1x16x16xf32>
    %cst_69 = arith.constant 0.00102838012 : f32
    %260 = vector.broadcast %cst_69 : f32 to vector<1x16x16xf32>
    %261 = arith.mulf %260, %259 : vector<1x16x16xf32>
    %262 = arith.addf %258, %261 : vector<1x16x16xf32>
    %263 = vector.extract_strided_slice %3 {offsets = [0, 0, 0], sizes = [1, 26, 16], strides = [1, 1, 1]} : vector<1x26x26xf32> to vector<1x26x16xf32>
    %cst_70 = arith.constant 0.00102838012 : f32
    %264 = vector.broadcast %cst_70 : f32 to vector<1x26x16xf32>
    %265 = arith.mulf %264, %263 : vector<1x26x16xf32>
    %266 = vector.extract_strided_slice %3 {offsets = [0, 0, 1], sizes = [1, 26, 16], strides = [1, 1, 1]} : vector<1x26x26xf32> to vector<1x26x16xf32>
    %cst_71 = arith.constant 0.00759875821 : f32
    %267 = vector.broadcast %cst_71 : f32 to vector<1x26x16xf32>
    %268 = arith.mulf %267, %266 : vector<1x26x16xf32>
    %269 = arith.addf %265, %268 : vector<1x26x16xf32>
    %270 = vector.extract_strided_slice %3 {offsets = [0, 0, 2], sizes = [1, 26, 16], strides = [1, 1, 1]} : vector<1x26x26xf32> to vector<1x26x16xf32>
    %cst_72 = arith.constant 0.0360007733 : f32
    %271 = vector.broadcast %cst_72 : f32 to vector<1x26x16xf32>
    %272 = arith.mulf %271, %270 : vector<1x26x16xf32>
    %273 = arith.addf %269, %272 : vector<1x26x16xf32>
    %274 = vector.extract_strided_slice %3 {offsets = [0, 0, 3], sizes = [1, 26, 16], strides = [1, 1, 1]} : vector<1x26x26xf32> to vector<1x26x16xf32>
    %cst_73 = arith.constant 0.109360687 : f32
    %275 = vector.broadcast %cst_73 : f32 to vector<1x26x16xf32>
    %276 = arith.mulf %275, %274 : vector<1x26x16xf32>
    %277 = arith.addf %273, %276 : vector<1x26x16xf32>
    %278 = vector.extract_strided_slice %3 {offsets = [0, 0, 4], sizes = [1, 26, 16], strides = [1, 1, 1]} : vector<1x26x26xf32> to vector<1x26x16xf32>
    %cst_74 = arith.constant 0.213005543 : f32
    %279 = vector.broadcast %cst_74 : f32 to vector<1x26x16xf32>
    %280 = arith.mulf %279, %278 : vector<1x26x16xf32>
    %281 = arith.addf %277, %280 : vector<1x26x16xf32>
    %282 = vector.extract_strided_slice %3 {offsets = [0, 0, 5], sizes = [1, 26, 16], strides = [1, 1, 1]} : vector<1x26x26xf32> to vector<1x26x16xf32>
    %cst_75 = arith.constant 0.266011715 : f32
    %283 = vector.broadcast %cst_75 : f32 to vector<1x26x16xf32>
    %284 = arith.mulf %283, %282 : vector<1x26x16xf32>
    %285 = arith.addf %281, %284 : vector<1x26x16xf32>
    %286 = vector.extract_strided_slice %3 {offsets = [0, 0, 6], sizes = [1, 26, 16], strides = [1, 1, 1]} : vector<1x26x26xf32> to vector<1x26x16xf32>
    %cst_76 = arith.constant 0.213005543 : f32
    %287 = vector.broadcast %cst_76 : f32 to vector<1x26x16xf32>
    %288 = arith.mulf %287, %286 : vector<1x26x16xf32>
    %289 = arith.addf %285, %288 : vector<1x26x16xf32>
    %290 = vector.extract_strided_slice %3 {offsets = [0, 0, 7], sizes = [1, 26, 16], strides = [1, 1, 1]} : vector<1x26x26xf32> to vector<1x26x16xf32>
    %cst_77 = arith.constant 0.109360687 : f32
    %291 = vector.broadcast %cst_77 : f32 to vector<1x26x16xf32>
    %292 = arith.mulf %291, %290 : vector<1x26x16xf32>
    %293 = arith.addf %289, %292 : vector<1x26x16xf32>
    %294 = vector.extract_strided_slice %3 {offsets = [0, 0, 8], sizes = [1, 26, 16], strides = [1, 1, 1]} : vector<1x26x26xf32> to vector<1x26x16xf32>
    %cst_78 = arith.constant 0.0360007733 : f32
    %295 = vector.broadcast %cst_78 : f32 to vector<1x26x16xf32>
    %296 = arith.mulf %295, %294 : vector<1x26x16xf32>
    %297 = arith.addf %293, %296 : vector<1x26x16xf32>
    %298 = vector.extract_strided_slice %3 {offsets = [0, 0, 9], sizes = [1, 26, 16], strides = [1, 1, 1]} : vector<1x26x26xf32> to vector<1x26x16xf32>
    %cst_79 = arith.constant 0.00759875821 : f32
    %299 = vector.broadcast %cst_79 : f32 to vector<1x26x16xf32>
    %300 = arith.mulf %299, %298 : vector<1x26x16xf32>
    %301 = arith.addf %297, %300 : vector<1x26x16xf32>
    %302 = vector.extract_strided_slice %3 {offsets = [0, 0, 10], sizes = [1, 26, 16], strides = [1, 1, 1]} : vector<1x26x26xf32> to vector<1x26x16xf32>
    %cst_80 = arith.constant 0.00102838012 : f32
    %303 = vector.broadcast %cst_80 : f32 to vector<1x26x16xf32>
    %304 = arith.mulf %303, %302 : vector<1x26x16xf32>
    %305 = arith.addf %301, %304 : vector<1x26x16xf32>
    %306 = vector.extract_strided_slice %305 {offsets = [0, 0, 0], sizes = [1, 16, 16], strides = [1, 1, 1]} : vector<1x26x16xf32> to vector<1x16x16xf32>
    %cst_81 = arith.constant 0.00102838012 : f32
    %307 = vector.broadcast %cst_81 : f32 to vector<1x16x16xf32>
    %308 = arith.mulf %307, %306 : vector<1x16x16xf32>
    %309 = vector.extract_strided_slice %305 {offsets = [0, 1, 0], sizes = [1, 16, 16], strides = [1, 1, 1]} : vector<1x26x16xf32> to vector<1x16x16xf32>
    %cst_82 = arith.constant 0.00759875821 : f32
    %310 = vector.broadcast %cst_82 : f32 to vector<1x16x16xf32>
    %311 = arith.mulf %310, %309 : vector<1x16x16xf32>
    %312 = arith.addf %308, %311 : vector<1x16x16xf32>
    %313 = vector.extract_strided_slice %305 {offsets = [0, 2, 0], sizes = [1, 16, 16], strides = [1, 1, 1]} : vector<1x26x16xf32> to vector<1x16x16xf32>
    %cst_83 = arith.constant 0.0360007733 : f32
    %314 = vector.broadcast %cst_83 : f32 to vector<1x16x16xf32>
    %315 = arith.mulf %314, %313 : vector<1x16x16xf32>
    %316 = arith.addf %312, %315 : vector<1x16x16xf32>
    %317 = vector.extract_strided_slice %305 {offsets = [0, 3, 0], sizes = [1, 16, 16], strides = [1, 1, 1]} : vector<1x26x16xf32> to vector<1x16x16xf32>
    %cst_84 = arith.constant 0.109360687 : f32
    %318 = vector.broadcast %cst_84 : f32 to vector<1x16x16xf32>
    %319 = arith.mulf %318, %317 : vector<1x16x16xf32>
    %320 = arith.addf %316, %319 : vector<1x16x16xf32>
    %321 = vector.extract_strided_slice %305 {offsets = [0, 4, 0], sizes = [1, 16, 16], strides = [1, 1, 1]} : vector<1x26x16xf32> to vector<1x16x16xf32>
    %cst_85 = arith.constant 0.213005543 : f32
    %322 = vector.broadcast %cst_85 : f32 to vector<1x16x16xf32>
    %323 = arith.mulf %322, %321 : vector<1x16x16xf32>
    %324 = arith.addf %320, %323 : vector<1x16x16xf32>
    %325 = vector.extract_strided_slice %305 {offsets = [0, 5, 0], sizes = [1, 16, 16], strides = [1, 1, 1]} : vector<1x26x16xf32> to vector<1x16x16xf32>
    %cst_86 = arith.constant 0.266011715 : f32
    %326 = vector.broadcast %cst_86 : f32 to vector<1x16x16xf32>
    %327 = arith.mulf %326, %325 : vector<1x16x16xf32>
    %328 = arith.addf %324, %327 : vector<1x16x16xf32>
    %329 = vector.extract_strided_slice %305 {offsets = [0, 6, 0], sizes = [1, 16, 16], strides = [1, 1, 1]} : vector<1x26x16xf32> to vector<1x16x16xf32>
    %cst_87 = arith.constant 0.213005543 : f32
    %330 = vector.broadcast %cst_87 : f32 to vector<1x16x16xf32>
    %331 = arith.mulf %330, %329 : vector<1x16x16xf32>
    %332 = arith.addf %328, %331 : vector<1x16x16xf32>
    %333 = vector.extract_strided_slice %305 {offsets = [0, 7, 0], sizes = [1, 16, 16], strides = [1, 1, 1]} : vector<1x26x16xf32> to vector<1x16x16xf32>
    %cst_88 = arith.constant 0.109360687 : f32
    %334 = vector.broadcast %cst_88 : f32 to vector<1x16x16xf32>
    %335 = arith.mulf %334, %333 : vector<1x16x16xf32>
    %336 = arith.addf %332, %335 : vector<1x16x16xf32>
    %337 = vector.extract_strided_slice %305 {offsets = [0, 8, 0], sizes = [1, 16, 16], strides = [1, 1, 1]} : vector<1x26x16xf32> to vector<1x16x16xf32>
    %cst_89 = arith.constant 0.0360007733 : f32
    %338 = vector.broadcast %cst_89 : f32 to vector<1x16x16xf32>
    %339 = arith.mulf %338, %337 : vector<1x16x16xf32>
    %340 = arith.addf %336, %339 : vector<1x16x16xf32>
    %341 = vector.extract_strided_slice %305 {offsets = [0, 9, 0], sizes = [1, 16, 16], strides = [1, 1, 1]} : vector<1x26x16xf32> to vector<1x16x16xf32>
    %cst_90 = arith.constant 0.00759875821 : f32
    %342 = vector.broadcast %cst_90 : f32 to vector<1x16x16xf32>
    %343 = arith.mulf %342, %341 : vector<1x16x16xf32>
    %344 = arith.addf %340, %343 : vector<1x16x16xf32>
    %345 = vector.extract_strided_slice %305 {offsets = [0, 10, 0], sizes = [1, 16, 16], strides = [1, 1, 1]} : vector<1x26x16xf32> to vector<1x16x16xf32>
    %cst_91 = arith.constant 0.00102838012 : f32
    %346 = vector.broadcast %cst_91 : f32 to vector<1x16x16xf32>
    %347 = arith.mulf %346, %345 : vector<1x16x16xf32>
    %348 = arith.addf %344, %347 : vector<1x16x16xf32>
    %349 = vector.extract_strided_slice %4 {offsets = [0, 0, 0], sizes = [1, 26, 16], strides = [1, 1, 1]} : vector<1x26x26xf32> to vector<1x26x16xf32>
    %cst_92 = arith.constant 0.00102838012 : f32
    %350 = vector.broadcast %cst_92 : f32 to vector<1x26x16xf32>
    %351 = arith.mulf %350, %349 : vector<1x26x16xf32>
    %352 = vector.extract_strided_slice %4 {offsets = [0, 0, 1], sizes = [1, 26, 16], strides = [1, 1, 1]} : vector<1x26x26xf32> to vector<1x26x16xf32>
    %cst_93 = arith.constant 0.00759875821 : f32
    %353 = vector.broadcast %cst_93 : f32 to vector<1x26x16xf32>
    %354 = arith.mulf %353, %352 : vector<1x26x16xf32>
    %355 = arith.addf %351, %354 : vector<1x26x16xf32>
    %356 = vector.extract_strided_slice %4 {offsets = [0, 0, 2], sizes = [1, 26, 16], strides = [1, 1, 1]} : vector<1x26x26xf32> to vector<1x26x16xf32>
    %cst_94 = arith.constant 0.0360007733 : f32
    %357 = vector.broadcast %cst_94 : f32 to vector<1x26x16xf32>
    %358 = arith.mulf %357, %356 : vector<1x26x16xf32>
    %359 = arith.addf %355, %358 : vector<1x26x16xf32>
    %360 = vector.extract_strided_slice %4 {offsets = [0, 0, 3], sizes = [1, 26, 16], strides = [1, 1, 1]} : vector<1x26x26xf32> to vector<1x26x16xf32>
    %cst_95 = arith.constant 0.109360687 : f32
    %361 = vector.broadcast %cst_95 : f32 to vector<1x26x16xf32>
    %362 = arith.mulf %361, %360 : vector<1x26x16xf32>
    %363 = arith.addf %359, %362 : vector<1x26x16xf32>
    %364 = vector.extract_strided_slice %4 {offsets = [0, 0, 4], sizes = [1, 26, 16], strides = [1, 1, 1]} : vector<1x26x26xf32> to vector<1x26x16xf32>
    %cst_96 = arith.constant 0.213005543 : f32
    %365 = vector.broadcast %cst_96 : f32 to vector<1x26x16xf32>
    %366 = arith.mulf %365, %364 : vector<1x26x16xf32>
    %367 = arith.addf %363, %366 : vector<1x26x16xf32>
    %368 = vector.extract_strided_slice %4 {offsets = [0, 0, 5], sizes = [1, 26, 16], strides = [1, 1, 1]} : vector<1x26x26xf32> to vector<1x26x16xf32>
    %cst_97 = arith.constant 0.266011715 : f32
    %369 = vector.broadcast %cst_97 : f32 to vector<1x26x16xf32>
    %370 = arith.mulf %369, %368 : vector<1x26x16xf32>
    %371 = arith.addf %367, %370 : vector<1x26x16xf32>
    %372 = vector.extract_strided_slice %4 {offsets = [0, 0, 6], sizes = [1, 26, 16], strides = [1, 1, 1]} : vector<1x26x26xf32> to vector<1x26x16xf32>
    %cst_98 = arith.constant 0.213005543 : f32
    %373 = vector.broadcast %cst_98 : f32 to vector<1x26x16xf32>
    %374 = arith.mulf %373, %372 : vector<1x26x16xf32>
    %375 = arith.addf %371, %374 : vector<1x26x16xf32>
    %376 = vector.extract_strided_slice %4 {offsets = [0, 0, 7], sizes = [1, 26, 16], strides = [1, 1, 1]} : vector<1x26x26xf32> to vector<1x26x16xf32>
    %cst_99 = arith.constant 0.109360687 : f32
    %377 = vector.broadcast %cst_99 : f32 to vector<1x26x16xf32>
    %378 = arith.mulf %377, %376 : vector<1x26x16xf32>
    %379 = arith.addf %375, %378 : vector<1x26x16xf32>
    %380 = vector.extract_strided_slice %4 {offsets = [0, 0, 8], sizes = [1, 26, 16], strides = [1, 1, 1]} : vector<1x26x26xf32> to vector<1x26x16xf32>
    %cst_100 = arith.constant 0.0360007733 : f32
    %381 = vector.broadcast %cst_100 : f32 to vector<1x26x16xf32>
    %382 = arith.mulf %381, %380 : vector<1x26x16xf32>
    %383 = arith.addf %379, %382 : vector<1x26x16xf32>
    %384 = vector.extract_strided_slice %4 {offsets = [0, 0, 9], sizes = [1, 26, 16], strides = [1, 1, 1]} : vector<1x26x26xf32> to vector<1x26x16xf32>
    %cst_101 = arith.constant 0.00759875821 : f32
    %385 = vector.broadcast %cst_101 : f32 to vector<1x26x16xf32>
    %386 = arith.mulf %385, %384 : vector<1x26x16xf32>
    %387 = arith.addf %383, %386 : vector<1x26x16xf32>
    %388 = vector.extract_strided_slice %4 {offsets = [0, 0, 10], sizes = [1, 26, 16], strides = [1, 1, 1]} : vector<1x26x26xf32> to vector<1x26x16xf32>
    %cst_102 = arith.constant 0.00102838012 : f32
    %389 = vector.broadcast %cst_102 : f32 to vector<1x26x16xf32>
    %390 = arith.mulf %389, %388 : vector<1x26x16xf32>
    %391 = arith.addf %387, %390 : vector<1x26x16xf32>
    %392 = vector.extract_strided_slice %391 {offsets = [0, 0, 0], sizes = [1, 16, 16], strides = [1, 1, 1]} : vector<1x26x16xf32> to vector<1x16x16xf32>
    %cst_103 = arith.constant 0.00102838012 : f32
    %393 = vector.broadcast %cst_103 : f32 to vector<1x16x16xf32>
    %394 = arith.mulf %393, %392 : vector<1x16x16xf32>
    %395 = vector.extract_strided_slice %391 {offsets = [0, 1, 0], sizes = [1, 16, 16], strides = [1, 1, 1]} : vector<1x26x16xf32> to vector<1x16x16xf32>
    %cst_104 = arith.constant 0.00759875821 : f32
    %396 = vector.broadcast %cst_104 : f32 to vector<1x16x16xf32>
    %397 = arith.mulf %396, %395 : vector<1x16x16xf32>
    %398 = arith.addf %394, %397 : vector<1x16x16xf32>
    %399 = vector.extract_strided_slice %391 {offsets = [0, 2, 0], sizes = [1, 16, 16], strides = [1, 1, 1]} : vector<1x26x16xf32> to vector<1x16x16xf32>
    %cst_105 = arith.constant 0.0360007733 : f32
    %400 = vector.broadcast %cst_105 : f32 to vector<1x16x16xf32>
    %401 = arith.mulf %400, %399 : vector<1x16x16xf32>
    %402 = arith.addf %398, %401 : vector<1x16x16xf32>
    %403 = vector.extract_strided_slice %391 {offsets = [0, 3, 0], sizes = [1, 16, 16], strides = [1, 1, 1]} : vector<1x26x16xf32> to vector<1x16x16xf32>
    %cst_106 = arith.constant 0.109360687 : f32
    %404 = vector.broadcast %cst_106 : f32 to vector<1x16x16xf32>
    %405 = arith.mulf %404, %403 : vector<1x16x16xf32>
    %406 = arith.addf %402, %405 : vector<1x16x16xf32>
    %407 = vector.extract_strided_slice %391 {offsets = [0, 4, 0], sizes = [1, 16, 16], strides = [1, 1, 1]} : vector<1x26x16xf32> to vector<1x16x16xf32>
    %cst_107 = arith.constant 0.213005543 : f32
    %408 = vector.broadcast %cst_107 : f32 to vector<1x16x16xf32>
    %409 = arith.mulf %408, %407 : vector<1x16x16xf32>
    %410 = arith.addf %406, %409 : vector<1x16x16xf32>
    %411 = vector.extract_strided_slice %391 {offsets = [0, 5, 0], sizes = [1, 16, 16], strides = [1, 1, 1]} : vector<1x26x16xf32> to vector<1x16x16xf32>
    %cst_108 = arith.constant 0.266011715 : f32
    %412 = vector.broadcast %cst_108 : f32 to vector<1x16x16xf32>
    %413 = arith.mulf %412, %411 : vector<1x16x16xf32>
    %414 = arith.addf %410, %413 : vector<1x16x16xf32>
    %415 = vector.extract_strided_slice %391 {offsets = [0, 6, 0], sizes = [1, 16, 16], strides = [1, 1, 1]} : vector<1x26x16xf32> to vector<1x16x16xf32>
    %cst_109 = arith.constant 0.213005543 : f32
    %416 = vector.broadcast %cst_109 : f32 to vector<1x16x16xf32>
    %417 = arith.mulf %416, %415 : vector<1x16x16xf32>
    %418 = arith.addf %414, %417 : vector<1x16x16xf32>
    %419 = vector.extract_strided_slice %391 {offsets = [0, 7, 0], sizes = [1, 16, 16], strides = [1, 1, 1]} : vector<1x26x16xf32> to vector<1x16x16xf32>
    %cst_110 = arith.constant 0.109360687 : f32
    %420 = vector.broadcast %cst_110 : f32 to vector<1x16x16xf32>
    %421 = arith.mulf %420, %419 : vector<1x16x16xf32>
    %422 = arith.addf %418, %421 : vector<1x16x16xf32>
    %423 = vector.extract_strided_slice %391 {offsets = [0, 8, 0], sizes = [1, 16, 16], strides = [1, 1, 1]} : vector<1x26x16xf32> to vector<1x16x16xf32>
    %cst_111 = arith.constant 0.0360007733 : f32
    %424 = vector.broadcast %cst_111 : f32 to vector<1x16x16xf32>
    %425 = arith.mulf %424, %423 : vector<1x16x16xf32>
    %426 = arith.addf %422, %425 : vector<1x16x16xf32>
    %427 = vector.extract_strided_slice %391 {offsets = [0, 9, 0], sizes = [1, 16, 16], strides = [1, 1, 1]} : vector<1x26x16xf32> to vector<1x16x16xf32>
    %cst_112 = arith.constant 0.00759875821 : f32
    %428 = vector.broadcast %cst_112 : f32 to vector<1x16x16xf32>
    %429 = arith.mulf %428, %427 : vector<1x16x16xf32>
    %430 = arith.addf %426, %429 : vector<1x16x16xf32>
    %431 = vector.extract_strided_slice %391 {offsets = [0, 10, 0], sizes = [1, 16, 16], strides = [1, 1, 1]} : vector<1x26x16xf32> to vector<1x16x16xf32>
    %cst_113 = arith.constant 0.00102838012 : f32
    %432 = vector.broadcast %cst_113 : f32 to vector<1x16x16xf32>
    %433 = arith.mulf %432, %431 : vector<1x16x16xf32>
    %434 = arith.addf %430, %433 : vector<1x16x16xf32>
    %435 = arith.mulf %90, %90 : vector<1x16x16xf32>
    %436 = arith.mulf %176, %176 : vector<1x16x16xf32>
    %437 = arith.mulf %90, %176 : vector<1x16x16xf32>
    %438 = arith.subf %262, %435 : vector<1x16x16xf32>
    %439 = arith.subf %348, %436 : vector<1x16x16xf32>
    %440 = arith.subf %434, %437 : vector<1x16x16xf32>
    %cst_114 = arith.constant 2.000000e+00 : f32
    %441 = vector.broadcast %cst_114 : f32 to vector<1x16x16xf32>
    %442 = arith.mulf %441, %437 : vector<1x16x16xf32>
    %cst_115 = arith.constant 9.99999974E-5 : f32
    %443 = vector.broadcast %cst_115 : f32 to vector<1x16x16xf32>
    %444 = arith.addf %442, %443 : vector<1x16x16xf32>
    %cst_116 = arith.constant 2.000000e+00 : f32
    %445 = vector.broadcast %cst_116 : f32 to vector<1x16x16xf32>
    %446 = arith.mulf %445, %440 : vector<1x16x16xf32>
    %cst_117 = arith.constant 8.99999984E-4 : f32
    %447 = vector.broadcast %cst_117 : f32 to vector<1x16x16xf32>
    %448 = arith.addf %446, %447 : vector<1x16x16xf32>
    %449 = arith.mulf %444, %448 : vector<1x16x16xf32>
    %450 = arith.addf %435, %436 : vector<1x16x16xf32>
    %cst_118 = arith.constant 9.99999974E-5 : f32
    %451 = vector.broadcast %cst_118 : f32 to vector<1x16x16xf32>
    %452 = arith.addf %450, %451 : vector<1x16x16xf32>
    %453 = arith.addf %438, %439 : vector<1x16x16xf32>
    %cst_119 = arith.constant 8.99999984E-4 : f32
    %454 = vector.broadcast %cst_119 : f32 to vector<1x16x16xf32>
    %455 = arith.addf %453, %454 : vector<1x16x16xf32>
    %456 = arith.mulf %452, %455 : vector<1x16x16xf32>
    %457 = tpu.reciprocal %456 : vector<1x16x16xf32> -> vector<1x16x16xf32>
    %458 = arith.mulf %449, %457 : vector<1x16x16xf32>
    %459 = vector.shape_cast %458 : vector<1x16x16xf32> to vector<1x1x16x16xf32>
    %cst_120 = arith.constant dense<0.000000e+00> : vector<1xf32>
    %460 = vector.multi_reduction <add>, %459, %cst_120 [1, 2, 3] : vector<1x1x16x16xf32> to vector<1xf32>
    %461 = vector.shape_cast %460 : vector<1xf32> to vector<1x1x1x1xf32>
    %462 = vector.extract %461[0, 0, 0, 0] : f32 from vector<1x1x1x1xf32>
    %cst_121 = arith.constant 3.906250e-03 : f32
    %463 = arith.mulf %462, %cst_121 : f32
    %cst_122 = arith.constant 1.000000e+00 : f32
    %464 = vector.broadcast %cst_122 : f32 to vector<1x8x128xf32>
    %465 = vector.broadcast %463 : f32 to vector<1x8x128xf32>
    %466 = arith.mulf %465, %464 : vector<1x8x128xf32>
    %c0_123 = arith.constant 0 : index
    %c0_124 = arith.constant 0 : index
    %c0_125 = arith.constant 0 : index
    %467 = vector.load %arg3[%c0_123, %c0_124, %c0_125] : memref<1x8x128xf32, #tpu.memory_space<vmem>>, vector<1x8x128xf32>
    tpu.vector_store %arg3[%c0_123, %c0_124, %c0_125], %466 {strides = array<i32>} : memref<1x8x128xf32, #tpu.memory_space<vmem>>, vector<1x8x128xf32>,
    return
  }
  func.func @transform_0(%arg0: i32) -> (i32, i32, i32) {
    %c0_i32 = arith.constant 0 : i32
    %c0_i32_0 = arith.constant 0 : i32
    %c0_i32_1 = arith.constant 0 : i32
    return %arg0, %c0_i32, %c0_i32_0 : i32, i32, i32
  }
  func.func @transform_1(%arg0: i32) -> (i32, i32, i32) {
    %c0_i32 = arith.constant 0 : i32
    %c0_i32_0 = arith.constant 0 : i32
    %c0_i32_1 = arith.constant 0 : i32
    return %arg0, %c0_i32, %c0_i32_0 : i32, i32, i32
  }
  func.func @transform_2(%arg0: i32) -> (i32, i32, i32) {
    %c0_i32 = arith.constant 0 : i32
    %c0_i32_0 = arith.constant 0 : i32
    %c0_i32_1 = arith.constant 0 : i32
    return %arg0, %c0_i32, %c0_i32_0 : i32, i32, i32
  }
}

</mosaic_0001>

<llo_original>
// kernel: tpu_custom_call.1
$region0: #{tpu_custom_call.1}
  #allocation0 [shape = 'u32[]', space=smem, size = 0x4, offset = 0x4, fixed_abs, tag = 'smem constant byte address 0x4 - core index']
  #allocation1 [shape = 'u32[144,128]{1,0:T(1,128)}', space=vmem, size = 0x12000, scoped, tag = 'internal scratch']
  %s0 = inlined_call_operand.vmem [shape: f32[2,26,26], index: 0, kind: input, shape index: {}]
  %s1 = inlined_call_operand.vmem [shape: f32[2,26,26], index: 1, kind: input, shape index: {}]
  %s2 = inlined_call_operand.hbm [shape: f32[2,8,128], index: 2, kind: output, shape index: {}]
  %s3 = sld [smem:[#allocation0]]
  $region41: #{tpu_custom_call.1} parent=0
    _
  %s5 = ssub.s32 1, %s3
  %s6 = scalar_select 0, %s5, %s3
  $region1: #{tpu_custom_call.1} parent=0
    #allocation2 [shape = 'u8[8192]{0}', space=vmem, size = 0x2000, scoped, tag = 'output window, operand 0']
    #allocation3 [shape = 's32[2]{0}', space=sflag, size = 0x8, scoped, tag = 'scoped memory for tpu_custom_call.1']
    %7 = vsyncpa [#allocation3], 0
    %s8 = scalar_lea.sflag [#allocation3], 1
    %9 = vsyncpa %s8, 0
    loop: start=0, step=1, limit=4
    $region2: #{tpu_custom_call.1} parent=1 // loop_pre_header
      _
    $region3: #{tpu_custom_call.1} parent=1 // loop_header
      %s11 = sphi 0, %s15
      %p12 = scmp.ge.s32.totalorder %s11, 4
      %s21 = sphi 0, %s23
      %s24 = sphi 0, %s21
      %s25 = sphi 0, %s24
      %s41 = sphi 0, %s25
      %s47 = sphi 0, %s49
      %s50 = sphi 0, %s47
      %s51 = sphi 0, %s50
      %s67 = sphi 0, %s51
      %s73 = sphi 0, %s75
      %s76 = sphi 0, %s73
      %s77 = sphi 0, %s76
      %s93 = sphi 0, %s77
    $region4: #{tpu_custom_call.1} parent=1 // loop_header_branch
      %14 = sbr.rel (%p12) target = $region8
    $region5: #{tpu_custom_call.1} parent=1 // loop_body
      %s16 = ssub.s32 %s11, 1
      %s17 = ssub.s32 %s11, 2
      %s18 = sadd.s32 %s11, 1
      %s19 = ssub.s32 %s11, %s18
      %p20 = scmp.eq.s32.totalorder %s19, 0
      %s22 = sadd.s32 %s21, 1
      %s23 = scalar_select %p20, %s21, %s22
      %p26 = pneg %p20
      %p27 = scmp.eq.s32.totalorder %s11, 1
      %p28 = por %p26, %p27
      %p29 = scmp.ne.s32.totalorder %s21, %s24
      %p30 = scmp.eq.s32.totalorder %s11, 0
      %p31 = por %p29, %p30
      %p32 = scmp.ne.s32.totalorder %s21, %s24
      %p33 = scmp.eq.s32.totalorder %s16, 1
      %p34 = por %p32, %p33
      %p35 = scmp.ne.s32.totalorder %s24, %s25
      %p36 = scmp.eq.s32.totalorder %s16, 0
      %p37 = por %p35, %p36
      %p38 = scmp.ne.s32.totalorder %s24, %s25
      %p39 = scmp.eq.s32.totalorder %s17, 1
      %p40 = por %p38, %p39
      %p42 = scmp.ne.s32.totalorder %s25, %s41
      %p43 = scmp.eq.s32.totalorder %s17, 0
      %p44 = por %p42, %p43
      %s45 = ssub.s32 %s11, %s18
      %p46 = scmp.eq.s32.totalorder %s45, 0
      %s48 = sadd.s32 %s47, 1
      %s49 = scalar_select %p46, %s47, %s48
      %p52 = pneg %p46
      %p53 = scmp.eq.s32.totalorder %s11, 1
      %p54 = por %p52, %p53
      %p55 = scmp.ne.s32.totalorder %s47, %s50
      %p56 = scmp.eq.s32.totalorder %s11, 0
      %p57 = por %p55, %p56
      %p58 = scmp.ne.s32.totalorder %s47, %s50
      %p59 = scmp.eq.s32.totalorder %s16, 1
      %p60 = por %p58, %p59
      %p61 = scmp.ne.s32.totalorder %s50, %s51
      %p62 = scmp.eq.s32.totalorder %s16, 0
      %p63 = por %p61, %p62
      %p64 = scmp.ne.s32.totalorder %s50, %s51
      %p65 = scmp.eq.s32.totalorder %s17, 1
      %p66 = por %p64, %p65
      %p68 = scmp.ne.s32.totalorder %s51, %s67
      %p69 = scmp.eq.s32.totalorder %s17, 0
      %p70 = por %p68, %p69
      %s71 = ssub.s32 %s11, %s18
      %p72 = scmp.eq.s32.totalorder %s71, 0
      %s74 = sadd.s32 %s73, 1
      %s75 = scalar_select %p72, %s73, %s74
      %p78 = pneg %p72
      %p79 = scmp.eq.s32.totalorder %s11, 1
      %p80 = por %p78, %p79
      %p81 = scmp.ne.s32.totalorder %s73, %s76
      %p82 = scmp.eq.s32.totalorder %s11, 0
      %p83 = por %p81, %p82
      %p84 = scmp.ne.s32.totalorder %s73, %s76
      %p85 = scmp.eq.s32.totalorder %s16, 1
      %p86 = por %p84, %p85
      %p87 = scmp.ne.s32.totalorder %s76, %s77
      %p88 = scmp.eq.s32.totalorder %s16, 0
      %p89 = por %p87, %p88
      %p90 = scmp.ne.s32.totalorder %s76, %s77
      %p91 = scmp.eq.s32.totalorder %s17, 1
      %p92 = por %p90, %p91
      %p94 = scmp.ne.s32.totalorder %s77, %s93
      %p95 = scmp.eq.s32.totalorder %s17, 0
      %p96 = por %p94, %p95
      %p97 = scmp.le.s32.totalorder 1, %s11
      %p98 = scmp.lt.s32.totalorder %s11, 3
      %p99 = pnand %p97, %p98
      %p100 = pneg %p99
      // Predicated region
      $region9: #{tpu_custom_call.1} parent=5 // pred_check
        _
      $region10: #{tpu_custom_call.1} parent=5 // pred_check_branch
        %102 = sbr.rel (%p99) target = $region12
      $region11: #{tpu_custom_call.1} parent=5 // pred_region
        %s103 = ssub.s32 %s11, 1
      $region12: #{tpu_custom_call.1} parent=5 // pred_fallthru
        _
      %p104 = scmp.lt.s32.totalorder %s11, 2
      // Predicated region
      $region13: #{tpu_custom_call.1} parent=5 // pred_check
        %p105 = pneg %p104
      $region14: #{tpu_custom_call.1} parent=5 // pred_check_branch
        %107 = sbr.rel (%p105) target = $region16
      $region15: #{tpu_custom_call.1} parent=5 // pred_region
        // Predicated region
        $region17: #{tpu_custom_call.1} parent=15 // pred_check
          %p108 = pneg %p31
        $region18: #{tpu_custom_call.1} parent=15 // pred_check_branch
          %110 = sbr.rel (%p108) target = $region20
        $region19: #{tpu_custom_call.1} parent=15 // pred_region
          %p111 = scmp.lt.s32.totalorder %s11, 1
          %s112 = scalar_select %p111, %s11, 1
          %s113 = smul.addr %s112, 4
          %s114 = smul.addr %s113, 8
          %s115 = scalar_lea.vmem %s0, %s114
        $region20: #{tpu_custom_call.1} parent=15 // pred_fallthru
          _
        // Predicated region
        $region21: #{tpu_custom_call.1} parent=15 // pred_check
          %p116 = pneg %p57
        $region22: #{tpu_custom_call.1} parent=15 // pred_check_branch
          %118 = sbr.rel (%p116) target = $region24
        $region23: #{tpu_custom_call.1} parent=15 // pred_region
          %p119 = scmp.lt.s32.totalorder %s11, 1
          %s120 = scalar_select %p119, %s11, 1
          %s121 = smul.addr %s120, 4
          %s122 = smul.addr %s121, 8
          %s123 = scalar_lea.vmem %s1, %s122
        $region24: #{tpu_custom_call.1} parent=15 // pred_fallthru
          _
      $region16: #{tpu_custom_call.1} parent=5 // pred_fallthru
        _
      %p124 = scmp.le.s32.totalorder 1, %s11
      %p125 = scmp.lt.s32.totalorder %s11, 3
      %p126 = pnand %p124, %p125
      %p127 = pneg %p126
      // Predicated region
      $region25: #{tpu_custom_call.1} parent=5 // pred_check
        _
      $region26: #{tpu_custom_call.1} parent=5 // pred_check_branch
        %129 = sbr.rel (%p126) target = $region28
      $region27: #{tpu_custom_call.1} parent=5 // pred_region
        %s130 = ssub.s32 %s11, 1
        %p131 = scmp.lt.s32.totalorder %s16, 1
        %s132 = scalar_select %p131, %s16, 1
        %s133 = smul.addr %s132, 4
        %s134 = smul.addr %s133, 8
        %s135 = scalar_lea.vmem %s0, %s134
        %p136 = pneg %p37
        %p137 = pneg %p34
        %p138 = scmp.lt.s32.totalorder %s16, 1
        %s139 = scalar_select %p138, %s16, 1
        %s140 = smul.addr %s139, 4
        %s141 = smul.addr %s140, 8
        %s142 = scalar_lea.vmem %s1, %s141
        %p143 = pneg %p63
        %p144 = pneg %p60
        %p145 = pneg %p89
        %p146 = pneg %p86
        %s147 = sand.u32 %s76, 1
        %s148 = scalar_lea.sflag [#allocation3], %s147
        %s149 = sand.u32 %s76, 1
        %s150 = smul.addr %s149, 8
        %s151 = scalar_lea.vmem [#allocation2], %s150
        %p152 = scmp.lt.s32.totalorder %s16, 1
        %s153 = scalar_select %p152, %s16, 1
        %s154 = smul.addr %s153, 4
        %s155 = smul.addr %s154, 8
        %s156 = scalar_lea.vmem %s0, %s155
        %p157 = scmp.lt.s32.totalorder %s16, 1
        %s158 = scalar_select %p157, %s16, 1
        %s159 = smul.addr %s158, 4
        %s160 = smul.addr %s159, 8
        %s161 = scalar_lea.vmem %s1, %s160
        %v162 = vld [vmem:[%s156] sm:$0xff]
        %v163 = vld [vmem:[%s156 + $0x8] sm:$0xff]
        %v164 = vld [vmem:[%s156 + $0x10] sm:$0xff]
        %v165 = vld [vmem:[%s156 + $0x18] sm:$0x3]
        %v166 = vld [vmem:[%s161] sm:$0xff]
        %v167 = vld [vmem:[%s161 + $0x8] sm:$0xff]
        %v168 = vld [vmem:[%s161 + $0x10] sm:$0xff]
        %v169 = vld [vmem:[%s161 + $0x18] sm:$0x3]
        %v170 = vmul.f32 %v162, %v162
        %v171 = vmul.f32 %v163, %v163
        %v172 = vmul.f32 %v164, %v164
        %v173 = vmul.f32 %v165, %v165
        %v174 = vmul.f32 %v166, %v166
        %v175 = vmul.f32 %v167, %v167
        %v176 = vmul.f32 %v168, %v168
        %v177 = vmul.f32 %v169, %v169
        %v178 = vmul.f32 %v162, %v166
        %v179 = vmul.f32 %v163, %v167
        %v180 = vmul.f32 %v164, %v168
        %v181 = vmul.f32 %v165, %v169
        %v182 = vmul.f32 %v162, 0.0010283801
        %v183 = vmul.f32 %v163, 0.0010283801
        %v184 = vmul.f32 %v164, 0.0010283801
        %v185 = vmul.f32 %v165, 0.0010283801
        %v186 = vmul.f32 %v162, 0.007598758
        %v187 = vmul.f32 %v163, 0.007598758
        %v188 = vmul.f32 %v164, 0.007598758
        %v189 = vmul.f32 %v165, 0.007598758
        %194 = vrot.lane.b32.xlu0 %v186, 127
        %v195 = vpop.permute.xlu0 %194
        %196 = vrot.lane.b32.xlu0 %v187, 127
        %v197 = vpop.permute.xlu0 %196
        %198 = vrot.lane.b32.xlu0 %v188, 127
        %v199 = vpop.permute.xlu0 %198
        %200 = vrot.lane.b32.xlu0 %v189, 127
        %v201 = vpop.permute.xlu0 %200
        %v206 = vadd.f32 %v182, %v195
        %v207 = vadd.f32 %v183, %v197
        %v208 = vadd.f32 %v184, %v199
        %v209 = vadd.f32 %v185, %v201
        %v210 = vmul.f32 %v162, 0.036000773
        %v211 = vmul.f32 %v163, 0.036000773
        %v212 = vmul.f32 %v164, 0.036000773
        %v213 = vmul.f32 %v165, 0.036000773
        %218 = vrot.lane.b32.xlu0 %v210, 126
        %v219 = vpop.permute.xlu0 %218
        %220 = vrot.lane.b32.xlu0 %v211, 126
        %v221 = vpop.permute.xlu0 %220
        %222 = vrot.lane.b32.xlu0 %v212, 126
        %v223 = vpop.permute.xlu0 %222
        %224 = vrot.lane.b32.xlu0 %v213, 126
        %v225 = vpop.permute.xlu0 %224
        %v230 = vadd.f32 %v206, %v219
        %v231 = vadd.f32 %v207, %v221
        %v232 = vadd.f32 %v208, %v223
        %v233 = vadd.f32 %v209, %v225
        %v234 = vmul.f32 %v162, 0.10936069
        %v235 = vmul.f32 %v163, 0.10936069
        %v236 = vmul.f32 %v164, 0.10936069
        %v237 = vmul.f32 %v165, 0.10936069
        %242 = vrot.lane.b32.xlu0 %v234, 125
        %v243 = vpop.permute.xlu0 %242
        %244 = vrot.lane.b32.xlu0 %v235, 125
        %v245 = vpop.permute.xlu0 %244
        %246 = vrot.lane.b32.xlu0 %v236, 125
        %v247 = vpop.permute.xlu0 %246
        %248 = vrot.lane.b32.xlu0 %v237, 125
        %v249 = vpop.permute.xlu0 %248
        %v254 = vadd.f32 %v230, %v243
        %v255 = vadd.f32 %v231, %v245
        %v256 = vadd.f32 %v232, %v247
        %v257 = vadd.f32 %v233, %v249
        %v258 = vmul.f32 %v162, 0.21300554
        %v259 = vmul.f32 %v163, 0.21300554
        %v260 = vmul.f32 %v164, 0.21300554
        %v261 = vmul.f32 %v165, 0.21300554
        %266 = vrot.lane.b32.xlu0 %v258, 124
        %v267 = vpop.permute.xlu0 %266
        %268 = vrot.lane.b32.xlu0 %v259, 124
        %v269 = vpop.permute.xlu0 %268
        %270 = vrot.lane.b32.xlu0 %v260, 124
        %v271 = vpop.permute.xlu0 %270
        %272 = vrot.lane.b32.xlu0 %v261, 124
        %v273 = vpop.permute.xlu0 %272
        %v278 = vadd.f32 %v254, %v267
        %v279 = vadd.f32 %v255, %v269
        %v280 = vadd.f32 %v256, %v271
        %v281 = vadd.f32 %v257, %v273
        %v282 = vmul.f32 %v162, 0.26601171
        %v283 = vmul.f32 %v163, 0.26601171
        %v284 = vmul.f32 %v164, 0.26601171
        %v285 = vmul.f32 %v165, 0.26601171
        %290 = vrot.lane.b32.xlu0 %v282, 123
        %v291 = vpop.permute.xlu0 %290
        %292 = vrot.lane.b32.xlu0 %v283, 123
        %v293 = vpop.permute.xlu0 %292
        %294 = vrot.lane.b32.xlu0 %v284, 123
        %v295 = vpop.permute.xlu0 %294
        %296 = vrot.lane.b32.xlu0 %v285, 123
        %v297 = vpop.permute.xlu0 %296
        %v302 = vadd.f32 %v278, %v291
        %v303 = vadd.f32 %v279, %v293
        %v304 = vadd.f32 %v280, %v295
        %v305 = vadd.f32 %v281, %v297
        %306 = vrot.lane.b32.xlu0 %v258, 122
        %v307 = vpop.permute.xlu0 %306
        %308 = vrot.lane.b32.xlu0 %v259, 122
        %v309 = vpop.permute.xlu0 %308
        %310 = vrot.lane.b32.xlu0 %v260, 122
        %v311 = vpop.permute.xlu0 %310
        %312 = vrot.lane.b32.xlu0 %v261, 122
        %v313 = vpop.permute.xlu0 %312
        %v318 = vadd.f32 %v302, %v307
        %v319 = vadd.f32 %v303, %v309
        %v320 = vadd.f32 %v304, %v311
        %v321 = vadd.f32 %v305, %v313
        %322 = vrot.lane.b32.xlu0 %v234, 121
        %v323 = vpop.permute.xlu0 %322
        %324 = vrot.lane.b32.xlu0 %v235, 121
        %v325 = vpop.permute.xlu0 %324
        %326 = vrot.lane.b32.xlu0 %v236, 121
        %v327 = vpop.permute.xlu0 %326
        %328 = vrot.lane.b32.xlu0 %v237, 121
        %v329 = vpop.permute.xlu0 %328
        %v334 = vadd.f32 %v318, %v323
        %v335 = vadd.f32 %v319, %v325
        %v336 = vadd.f32 %v320, %v327
        %v337 = vadd.f32 %v321, %v329
        %338 = vrot.lane.b32.xlu0 %v210, 120
        %v339 = vpop.permute.xlu0 %338
        %340 = vrot.lane.b32.xlu0 %v211, 120
        %v341 = vpop.permute.xlu0 %340
        %342 = vrot.lane.b32.xlu0 %v212, 120
        %v343 = vpop.permute.xlu0 %342
        %344 = vrot.lane.b32.xlu0 %v213, 120
        %v345 = vpop.permute.xlu0 %344
        %v350 = vadd.f32 %v334, %v339
        %v351 = vadd.f32 %v335, %v341
        %v352 = vadd.f32 %v336, %v343
        %v353 = vadd.f32 %v337, %v345
        %354 = vrot.lane.b32.xlu0 %v186, 119
        %v355 = vpop.permute.xlu0 %354
        %356 = vrot.lane.b32.xlu0 %v187, 119
        %v357 = vpop.permute.xlu0 %356
        %358 = vrot.lane.b32.xlu0 %v188, 119
        %v359 = vpop.permute.xlu0 %358
        %360 = vrot.lane.b32.xlu0 %v189, 119
        %v361 = vpop.permute.xlu0 %360
        %v366 = vadd.f32 %v350, %v355
        %v367 = vadd.f32 %v351, %v357
        %v368 = vadd.f32 %v352, %v359
        %v369 = vadd.f32 %v353, %v361
        %374 = vrot.lane.b32.xlu0 %v182, 118
        %v375 = vpop.permute.xlu0 %374
        %376 = vrot.lane.b32.xlu0 %v183, 118
        %v377 = vpop.permute.xlu0 %376
        %378 = vrot.lane.b32.xlu0 %v184, 118
        %v379 = vpop.permute.xlu0 %378
        %380 = vrot.lane.b32.xlu0 %v185, 118
        %v381 = vpop.permute.xlu0 %380
        %v386 = vadd.f32 %v366, %v375
        %v387 = vadd.f32 %v367, %v377
        %v388 = vadd.f32 %v368, %v379
        %v389 = vadd.f32 %v369, %v381
        %v390 = vmul.f32 %v386, 0.0010283801
        %v391 = vmul.f32 %v387, 0.0010283801
        %v392 = vmul.f32 %v386, 0.007598758
        %v393 = vmul.f32 %v387, 0.007598758
        %v394 = vmul.f32 %v388, 0.007598758
        %vm398 = vcmask 1046528
        %v399 = vrot.slane %v392, 1
        %v400 = vrot.slane %v393, 1
        %v401 = vsel %vm398, %v399, %v400
        %v402 = vrot.slane %v394, 1
        %v403 = vsel %vm398, %v400, %v402
        %v406 = vadd.f32 %v390, %v401
        %v407 = vadd.f32 %v391, %v403
        %v408 = vmul.f32 %v386, 0.036000773
        %v409 = vmul.f32 %v387, 0.036000773
        %v410 = vmul.f32 %v388, 0.036000773
        %vm414 = vcmask 1045504
        %v415 = vrot.slane %v408, 2
        %v416 = vrot.slane %v409, 2
        %v417 = vsel %vm414, %v415, %v416
        %v418 = vrot.slane %v410, 2
        %v419 = vsel %vm414, %v416, %v418
        %v422 = vadd.f32 %v406, %v417
        %v423 = vadd.f32 %v407, %v419
        %v424 = vmul.f32 %v386, 0.10936069
        %v425 = vmul.f32 %v387, 0.10936069
        %v426 = vmul.f32 %v388, 0.10936069
        %vm430 = vcmask 1044480
        %v431 = vrot.slane %v424, 3
        %v432 = vrot.slane %v425, 3
        %v433 = vsel %vm430, %v431, %v432
        %v434 = vrot.slane %v426, 3
        %v435 = vsel %vm430, %v432, %v434
        %v438 = vadd.f32 %v422, %v433
        %v439 = vadd.f32 %v423, %v435
        %v440 = vmul.f32 %v386, 0.21300554
        %v441 = vmul.f32 %v387, 0.21300554
        %v442 = vmul.f32 %v388, 0.21300554
        %vm446 = vcmask 1043456
        %v447 = vrot.slane %v440, 4
        %v448 = vrot.slane %v441, 4
        %v449 = vsel %vm446, %v447, %v448
        %v450 = vrot.slane %v442, 4
        %v451 = vsel %vm446, %v448, %v450
        %v454 = vadd.f32 %v438, %v449
        %v455 = vadd.f32 %v439, %v451
        %v456 = vmul.f32 %v386, 0.26601171
        %v457 = vmul.f32 %v387, 0.26601171
        %v458 = vmul.f32 %v388, 0.26601171
        %vm462 = vcmask 1042432
        %v463 = vrot.slane %v456, 5
        %v464 = vrot.slane %v457, 5
        %v465 = vsel %vm462, %v463, %v464
        %v466 = vrot.slane %v458, 5
        %v467 = vsel %vm462, %v464, %v466
        %v470 = vadd.f32 %v454, %v465
        %v471 = vadd.f32 %v455, %v467
        %vm472 = vcmask 1041408
        %v473 = vrot.slane %v440, 6
        %v474 = vrot.slane %v441, 6
        %v475 = vsel %vm472, %v473, %v474
        %v476 = vrot.slane %v442, 6
        %v477 = vsel %vm472, %v474, %v476
        %v480 = vadd.f32 %v470, %v475
        %v481 = vadd.f32 %v471, %v477
        %vm482 = vcmask 1040384
        %v483 = vrot.slane %v424, 7
        %v484 = vrot.slane %v425, 7
        %v485 = vsel %vm482, %v483, %v484
        %v486 = vrot.slane %v426, 7
        %v487 = vsel %vm482, %v484, %v486
        %v490 = vadd.f32 %v480, %v485
        %v491 = vadd.f32 %v481, %v487
        %v492 = vadd.f32 %v490, %v409
        %v493 = vadd.f32 %v491, %v410
        %v494 = vmul.f32 %v389, 0.007598758
        %v496 = vrot.slane %v494, 1
        %v497 = vsel %vm398, %v402, %v496
        %v499 = vadd.f32 %v492, %v403
        %v500 = vadd.f32 %v493, %v497
        %v501 = vmul.f32 %v388, 0.0010283801
        %v502 = vmul.f32 %v389, 0.0010283801
        %v506 = vrot.slane %v391, 2
        %v507 = vrot.slane %v501, 2
        %v508 = vsel %vm414, %v506, %v507
        %v509 = vrot.slane %v502, 2
        %v510 = vsel %vm414, %v507, %v509
        %v513 = vadd.f32 %v499, %v508
        %v514 = vadd.f32 %v500, %v510
        %v515 = vmul.f32 %v166, 0.0010283801
        %v516 = vmul.f32 %v167, 0.0010283801
        %v517 = vmul.f32 %v168, 0.0010283801
        %v518 = vmul.f32 %v169, 0.0010283801
        %v519 = vmul.f32 %v166, 0.007598758
        %v520 = vmul.f32 %v167, 0.007598758
        %v521 = vmul.f32 %v168, 0.007598758
        %v522 = vmul.f32 %v169, 0.007598758
        %527 = vrot.lane.b32.xlu0 %v519, 127
        %v528 = vpop.permute.xlu0 %527
        %529 = vrot.lane.b32.xlu0 %v520, 127
        %v530 = vpop.permute.xlu0 %529
        %531 = vrot.lane.b32.xlu0 %v521, 127
        %v532 = vpop.permute.xlu0 %531
        %533 = vrot.lane.b32.xlu0 %v522, 127
        %v534 = vpop.permute.xlu0 %533
        %v539 = vadd.f32 %v515, %v528
        %v540 = vadd.f32 %v516, %v530
        %v541 = vadd.f32 %v517, %v532
        %v542 = vadd.f32 %v518, %v534
        %v543 = vmul.f32 %v166, 0.036000773
        %v544 = vmul.f32 %v167, 0.036000773
        %v545 = vmul.f32 %v168, 0.036000773
        %v546 = vmul.f32 %v169, 0.036000773
        %551 = vrot.lane.b32.xlu0 %v543, 126
        %v552 = vpop.permute.xlu0 %551
        %553 = vrot.lane.b32.xlu0 %v544, 126
        %v554 = vpop.permute.xlu0 %553
        %555 = vrot.lane.b32.xlu0 %v545, 126
        %v556 = vpop.permute.xlu0 %555
        %557 = vrot.lane.b32.xlu0 %v546, 126
        %v558 = vpop.permute.xlu0 %557
        %v563 = vadd.f32 %v539, %v552
        %v564 = vadd.f32 %v540, %v554
        %v565 = vadd.f32 %v541, %v556
        %v566 = vadd.f32 %v542, %v558
        %v567 = vmul.f32 %v166, 0.10936069
        %v568 = vmul.f32 %v167, 0.10936069
        %v569 = vmul.f32 %v168, 0.10936069
        %v570 = vmul.f32 %v169, 0.10936069
        %575 = vrot.lane.b32.xlu0 %v567, 125
        %v576 = vpop.permute.xlu0 %575
        %577 = vrot.lane.b32.xlu0 %v568, 125
        %v578 = vpop.permute.xlu0 %577
        %579 = vrot.lane.b32.xlu0 %v569, 125
        %v580 = vpop.permute.xlu0 %579
        %581 = vrot.lane.b32.xlu0 %v570, 125
        %v582 = vpop.permute.xlu0 %581
        %v587 = vadd.f32 %v563, %v576
        %v588 = vadd.f32 %v564, %v578
        %v589 = vadd.f32 %v565, %v580
        %v590 = vadd.f32 %v566, %v582
        %v591 = vmul.f32 %v166, 0.21300554
        %v592 = vmul.f32 %v167, 0.21300554
        %v593 = vmul.f32 %v168, 0.21300554
        %v594 = vmul.f32 %v169, 0.21300554
        %599 = vrot.lane.b32.xlu0 %v591, 124
        %v600 = vpop.permute.xlu0 %599
        %601 = vrot.lane.b32.xlu0 %v592, 124
        %v602 = vpop.permute.xlu0 %601
        %603 = vrot.lane.b32.xlu0 %v593, 124
        %v604 = vpop.permute.xlu0 %603
        %605 = vrot.lane.b32.xlu0 %v594, 124
        %v606 = vpop.permute.xlu0 %605
        %v611 = vadd.f32 %v587, %v600
        %v612 = vadd.f32 %v588, %v602
        %v613 = vadd.f32 %v589, %v604
        %v614 = vadd.f32 %v590, %v606
        %v615 = vmul.f32 %v166, 0.26601171
        %v616 = vmul.f32 %v167, 0.26601171
        %v617 = vmul.f32 %v168, 0.26601171
        %v618 = vmul.f32 %v169, 0.26601171
        %623 = vrot.lane.b32.xlu0 %v615, 123
        %v624 = vpop.permute.xlu0 %623
        %625 = vrot.lane.b32.xlu0 %v616, 123
        %v626 = vpop.permute.xlu0 %625
        %627 = vrot.lane.b32.xlu0 %v617, 123
        %v628 = vpop.permute.xlu0 %627
        %629 = vrot.lane.b32.xlu0 %v618, 123
        %v630 = vpop.permute.xlu0 %629
        %v635 = vadd.f32 %v611, %v624
        %v636 = vadd.f32 %v612, %v626
        %v637 = vadd.f32 %v613, %v628
        %v638 = vadd.f32 %v614, %v630
        %639 = vrot.lane.b32.xlu0 %v591, 122
        %v640 = vpop.permute.xlu0 %639
        %641 = vrot.lane.b32.xlu0 %v592, 122
        %v642 = vpop.permute.xlu0 %641
        %643 = vrot.lane.b32.xlu0 %v593, 122
        %v644 = vpop.permute.xlu0 %643
        %645 = vrot.lane.b32.xlu0 %v594, 122
        %v646 = vpop.permute.xlu0 %645
        %v651 = vadd.f32 %v635, %v640
        %v652 = vadd.f32 %v636, %v642
        %v653 = vadd.f32 %v637, %v644
        %v654 = vadd.f32 %v638, %v646
        %655 = vrot.lane.b32.xlu0 %v567, 121
        %v656 = vpop.permute.xlu0 %655
        %657 = vrot.lane.b32.xlu0 %v568, 121
        %v658 = vpop.permute.xlu0 %657
        %659 = vrot.lane.b32.xlu0 %v569, 121
        %v660 = vpop.permute.xlu0 %659
        %661 = vrot.lane.b32.xlu0 %v570, 121
        %v662 = vpop.permute.xlu0 %661
        %v667 = vadd.f32 %v651, %v656
        %v668 = vadd.f32 %v652, %v658
        %v669 = vadd.f32 %v653, %v660
        %v670 = vadd.f32 %v654, %v662
        %671 = vrot.lane.b32.xlu0 %v543, 120
        %v672 = vpop.permute.xlu0 %671
        %673 = vrot.lane.b32.xlu0 %v544, 120
        %v674 = vpop.permute.xlu0 %673
        %675 = vrot.lane.b32.xlu0 %v545, 120
        %v676 = vpop.permute.xlu0 %675
        %677 = vrot.lane.b32.xlu0 %v546, 120
        %v678 = vpop.permute.xlu0 %677
        %v683 = vadd.f32 %v667, %v672
        %v684 = vadd.f32 %v668, %v674
        %v685 = vadd.f32 %v669, %v676
        %v686 = vadd.f32 %v670, %v678
        %687 = vrot.lane.b32.xlu0 %v519, 119
        %v688 = vpop.permute.xlu0 %687
        %689 = vrot.lane.b32.xlu0 %v520, 119
        %v690 = vpop.permute.xlu0 %689
        %691 = vrot.lane.b32.xlu0 %v521, 119
        %v692 = vpop.permute.xlu0 %691
        %693 = vrot.lane.b32.xlu0 %v522, 119
        %v694 = vpop.permute.xlu0 %693
        %v699 = vadd.f32 %v683, %v688
        %v700 = vadd.f32 %v684, %v690
        %v701 = vadd.f32 %v685, %v692
        %v702 = vadd.f32 %v686, %v694
        %707 = vrot.lane.b32.xlu0 %v515, 118
        %v708 = vpop.permute.xlu0 %707
        %709 = vrot.lane.b32.xlu0 %v516, 118
        %v710 = vpop.permute.xlu0 %709
        %711 = vrot.lane.b32.xlu0 %v517, 118
        %v712 = vpop.permute.xlu0 %711
        %713 = vrot.lane.b32.xlu0 %v518, 118
        %v714 = vpop.permute.xlu0 %713
        %v719 = vadd.f32 %v699, %v708
        %v720 = vadd.f32 %v700, %v710
        %v721 = vadd.f32 %v701, %v712
        %v722 = vadd.f32 %v702, %v714
        %v723 = vmul.f32 %v719, 0.0010283801
        %v724 = vmul.f32 %v720, 0.0010283801
        %v725 = vmul.f32 %v719, 0.007598758
        %v726 = vmul.f32 %v720, 0.007598758
        %v727 = vmul.f32 %v721, 0.007598758
        %v731 = vrot.slane %v725, 1
        %v732 = vrot.slane %v726, 1
        %v733 = vsel %vm398, %v731, %v732
        %v734 = vrot.slane %v727, 1
        %v735 = vsel %vm398, %v732, %v734
        %v738 = vadd.f32 %v723, %v733
        %v739 = vadd.f32 %v724, %v735
        %v740 = vmul.f32 %v719, 0.036000773
        %v741 = vmul.f32 %v720, 0.036000773
        %v742 = vmul.f32 %v721, 0.036000773
        %v746 = vrot.slane %v740, 2
        %v747 = vrot.slane %v741, 2
        %v748 = vsel %vm414, %v746, %v747
        %v749 = vrot.slane %v742, 2
        %v750 = vsel %vm414, %v747, %v749
        %v753 = vadd.f32 %v738, %v748
        %v754 = vadd.f32 %v739, %v750
        %v755 = vmul.f32 %v719, 0.10936069
        %v756 = vmul.f32 %v720, 0.10936069
        %v757 = vmul.f32 %v721, 0.10936069
        %v761 = vrot.slane %v755, 3
        %v762 = vrot.slane %v756, 3
        %v763 = vsel %vm430, %v761, %v762
        %v764 = vrot.slane %v757, 3
        %v765 = vsel %vm430, %v762, %v764
        %v768 = vadd.f32 %v753, %v763
        %v769 = vadd.f32 %v754, %v765
        %v770 = vmul.f32 %v719, 0.21300554
        %v771 = vmul.f32 %v720, 0.21300554
        %v772 = vmul.f32 %v721, 0.21300554
        %v776 = vrot.slane %v770, 4
        %v777 = vrot.slane %v771, 4
        %v778 = vsel %vm446, %v776, %v777
        %v779 = vrot.slane %v772, 4
        %v780 = vsel %vm446, %v777, %v779
        %v783 = vadd.f32 %v768, %v778
        %v784 = vadd.f32 %v769, %v780
        %v785 = vmul.f32 %v719, 0.26601171
        %v786 = vmul.f32 %v720, 0.26601171
        %v787 = vmul.f32 %v721, 0.26601171
        %v791 = vrot.slane %v785, 5
        %v792 = vrot.slane %v786, 5
        %v793 = vsel %vm462, %v791, %v792
        %v794 = vrot.slane %v787, 5
        %v795 = vsel %vm462, %v792, %v794
        %v798 = vadd.f32 %v783, %v793
        %v799 = vadd.f32 %v784, %v795
        %v800 = vrot.slane %v770, 6
        %v801 = vrot.slane %v771, 6
        %v802 = vsel %vm472, %v800, %v801
        %v803 = vrot.slane %v772, 6
        %v804 = vsel %vm472, %v801, %v803
        %v807 = vadd.f32 %v798, %v802
        %v808 = vadd.f32 %v799, %v804
        %v809 = vrot.slane %v755, 7
        %v810 = vrot.slane %v756, 7
        %v811 = vsel %vm482, %v809, %v810
        %v812 = vrot.slane %v757, 7
        %v813 = vsel %vm482, %v810, %v812
        %v816 = vadd.f32 %v807, %v811
        %v817 = vadd.f32 %v808, %v813
        %v818 = vadd.f32 %v816, %v741
        %v819 = vadd.f32 %v817, %v742
        %v820 = vmul.f32 %v722, 0.007598758
        %v822 = vrot.slane %v820, 1
        %v823 = vsel %vm398, %v734, %v822
        %v825 = vadd.f32 %v818, %v735
        %v826 = vadd.f32 %v819, %v823
        %v827 = vmul.f32 %v721, 0.0010283801
        %v828 = vmul.f32 %v722, 0.0010283801
        %v832 = vrot.slane %v724, 2
        %v833 = vrot.slane %v827, 2
        %v834 = vsel %vm414, %v832, %v833
        %v835 = vrot.slane %v828, 2
        %v836 = vsel %vm414, %v833, %v835
        %v839 = vadd.f32 %v825, %v834
        %v840 = vadd.f32 %v826, %v836
        %v841 = vmul.f32 %v170, 0.0010283801
        %v842 = vmul.f32 %v171, 0.0010283801
        %v843 = vmul.f32 %v172, 0.0010283801
        %v844 = vmul.f32 %v173, 0.0010283801
        %v845 = vmul.f32 %v170, 0.007598758
        %v846 = vmul.f32 %v171, 0.007598758
        %v847 = vmul.f32 %v172, 0.007598758
        %v848 = vmul.f32 %v173, 0.007598758
        %853 = vrot.lane.b32.xlu0 %v845, 127
        %v854 = vpop.permute.xlu0 %853
        %855 = vrot.lane.b32.xlu0 %v846, 127
        %v856 = vpop.permute.xlu0 %855
        %857 = vrot.lane.b32.xlu0 %v847, 127
        %v858 = vpop.permute.xlu0 %857
        %859 = vrot.lane.b32.xlu0 %v848, 127
        %v860 = vpop.permute.xlu0 %859
        %v865 = vadd.f32 %v841, %v854
        %v866 = vadd.f32 %v842, %v856
        %v867 = vadd.f32 %v843, %v858
        %v868 = vadd.f32 %v844, %v860
        %v869 = vmul.f32 %v170, 0.036000773
        %v870 = vmul.f32 %v171, 0.036000773
        %v871 = vmul.f32 %v172, 0.036000773
        %v872 = vmul.f32 %v173, 0.036000773
        %877 = vrot.lane.b32.xlu0 %v869, 126
        %v878 = vpop.permute.xlu0 %877
        %879 = vrot.lane.b32.xlu0 %v870, 126
        %v880 = vpop.permute.xlu0 %879
        %881 = vrot.lane.b32.xlu0 %v871, 126
        %v882 = vpop.permute.xlu0 %881
        %883 = vrot.lane.b32.xlu0 %v872, 126
        %v884 = vpop.permute.xlu0 %883
        %v889 = vadd.f32 %v865, %v878
        %v890 = vadd.f32 %v866, %v880
        %v891 = vadd.f32 %v867, %v882
        %v892 = vadd.f32 %v868, %v884
        %v893 = vmul.f32 %v170, 0.10936069
        %v894 = vmul.f32 %v171, 0.10936069
        %v895 = vmul.f32 %v172, 0.10936069
        %v896 = vmul.f32 %v173, 0.10936069
        %901 = vrot.lane.b32.xlu0 %v893, 125
        %v902 = vpop.permute.xlu0 %901
        %903 = vrot.lane.b32.xlu0 %v894, 125
        %v904 = vpop.permute.xlu0 %903
        %905 = vrot.lane.b32.xlu0 %v895, 125
        %v906 = vpop.permute.xlu0 %905
        %907 = vrot.lane.b32.xlu0 %v896, 125
        %v908 = vpop.permute.xlu0 %907
        %v913 = vadd.f32 %v889, %v902
        %v914 = vadd.f32 %v890, %v904
        %v915 = vadd.f32 %v891, %v906
        %v916 = vadd.f32 %v892, %v908
        %v917 = vmul.f32 %v170, 0.21300554
        %v918 = vmul.f32 %v171, 0.21300554
        %v919 = vmul.f32 %v172, 0.21300554
        %v920 = vmul.f32 %v173, 0.21300554
        %925 = vrot.lane.b32.xlu0 %v917, 124
        %v926 = vpop.permute.xlu0 %925
        %927 = vrot.lane.b32.xlu0 %v918, 124
        %v928 = vpop.permute.xlu0 %927
        %929 = vrot.lane.b32.xlu0 %v919, 124
        %v930 = vpop.permute.xlu0 %929
        %931 = vrot.lane.b32.xlu0 %v920, 124
        %v932 = vpop.permute.xlu0 %931
        %v937 = vadd.f32 %v913, %v926
        %v938 = vadd.f32 %v914, %v928
        %v939 = vadd.f32 %v915, %v930
        %v940 = vadd.f32 %v916, %v932
        %v941 = vmul.f32 %v170, 0.26601171
        %v942 = vmul.f32 %v171, 0.26601171
        %v943 = vmul.f32 %v172, 0.26601171
        %v944 = vmul.f32 %v173, 0.26601171
        %949 = vrot.lane.b32.xlu0 %v941, 123
        %v950 = vpop.permute.xlu0 %949
        %951 = vrot.lane.b32.xlu0 %v942, 123
        %v952 = vpop.permute.xlu0 %951
        %953 = vrot.lane.b32.xlu0 %v943, 123
        %v954 = vpop.permute.xlu0 %953
        %955 = vrot.lane.b32.xlu0 %v944, 123
        %v956 = vpop.permute.xlu0 %955
        %v961 = vadd.f32 %v937, %v950
        %v962 = vadd.f32 %v938, %v952
        %v963 = vadd.f32 %v939, %v954
        %v964 = vadd.f32 %v940, %v956
        %965 = vrot.lane.b32.xlu0 %v917, 122
        %v966 = vpop.permute.xlu0 %965
        %967 = vrot.lane.b32.xlu0 %v918, 122
        %v968 = vpop.permute.xlu0 %967
        %969 = vrot.lane.b32.xlu0 %v919, 122
        %v970 = vpop.permute.xlu0 %969
        %971 = vrot.lane.b32.xlu0 %v920, 122
        %v972 = vpop.permute.xlu0 %971
        %v977 = vadd.f32 %v961, %v966
        %v978 = vadd.f32 %v962, %v968
        %v979 = vadd.f32 %v963, %v970
        %v980 = vadd.f32 %v964, %v972
        %981 = vrot.lane.b32.xlu0 %v893, 121
        %v982 = vpop.permute.xlu0 %981
        %983 = vrot.lane.b32.xlu0 %v894, 121
        %v984 = vpop.permute.xlu0 %983
        %985 = vrot.lane.b32.xlu0 %v895, 121
        %v986 = vpop.permute.xlu0 %985
        %987 = vrot.lane.b32.xlu0 %v896, 121
        %v988 = vpop.permute.xlu0 %987
        %v993 = vadd.f32 %v977, %v982
        %v994 = vadd.f32 %v978, %v984
        %v995 = vadd.f32 %v979, %v986
        %v996 = vadd.f32 %v980, %v988
        %997 = vrot.lane.b32.xlu0 %v869, 120
        %v998 = vpop.permute.xlu0 %997
        %999 = vrot.lane.b32.xlu0 %v870, 120
        %v1000 = vpop.permute.xlu0 %999
        %1001 = vrot.lane.b32.xlu0 %v871, 120
        %v1002 = vpop.permute.xlu0 %1001
        %1003 = vrot.lane.b32.xlu0 %v872, 120
        %v1004 = vpop.permute.xlu0 %1003
        %v1009 = vadd.f32 %v993, %v998
        %v1010 = vadd.f32 %v994, %v1000
        %v1011 = vadd.f32 %v995, %v1002
        %v1012 = vadd.f32 %v996, %v1004
        %1013 = vrot.lane.b32.xlu0 %v845, 119
        %v1014 = vpop.permute.xlu0 %1013
        %1015 = vrot.lane.b32.xlu0 %v846, 119
        %v1016 = vpop.permute.xlu0 %1015
        %1017 = vrot.lane.b32.xlu0 %v847, 119
        %v1018 = vpop.permute.xlu0 %1017
        %1019 = vrot.lane.b32.xlu0 %v848, 119
        %v1020 = vpop.permute.xlu0 %1019
        %v1025 = vadd.f32 %v1009, %v1014
        %v1026 = vadd.f32 %v1010, %v1016
        %v1027 = vadd.f32 %v1011, %v1018
        %v1028 = vadd.f32 %v1012, %v1020
        %1033 = vrot.lane.b32.xlu0 %v841, 118
        %v1034 = vpop.permute.xlu0 %1033
        %1035 = vrot.lane.b32.xlu0 %v842, 118
        %v1036 = vpop.permute.xlu0 %1035
        %1037 = vrot.lane.b32.xlu0 %v843, 118
        %v1038 = vpop.permute.xlu0 %1037
        %1039 = vrot.lane.b32.xlu0 %v844, 118
        %v1040 = vpop.permute.xlu0 %1039
        %v1045 = vadd.f32 %v1025, %v1034
        %v1046 = vadd.f32 %v1026, %v1036
        %v1047 = vadd.f32 %v1027, %v1038
        %v1048 = vadd.f32 %v1028, %v1040
        %v1049 = vmul.f32 %v1045, 0.0010283801
        %v1050 = vmul.f32 %v1046, 0.0010283801
        %v1051 = vmul.f32 %v1045, 0.007598758
        %v1052 = vmul.f32 %v1046, 0.007598758
        %v1053 = vmul.f32 %v1047, 0.007598758
        %v1057 = vrot.slane %v1051, 1
        %v1058 = vrot.slane %v1052, 1
        %v1059 = vsel %vm398, %v1057, %v1058
        %v1060 = vrot.slane %v1053, 1
        %v1061 = vsel %vm398, %v1058, %v1060
        %v1064 = vadd.f32 %v1049, %v1059
        %v1065 = vadd.f32 %v1050, %v1061
        %v1066 = vmul.f32 %v1045, 0.036000773
        %v1067 = vmul.f32 %v1046, 0.036000773
        %v1068 = vmul.f32 %v1047, 0.036000773
        %v1072 = vrot.slane %v1066, 2
        %v1073 = vrot.slane %v1067, 2
        %v1074 = vsel %vm414, %v1072, %v1073
        %v1075 = vrot.slane %v1068, 2
        %v1076 = vsel %vm414, %v1073, %v1075
        %v1079 = vadd.f32 %v1064, %v1074
        %v1080 = vadd.f32 %v1065, %v1076
        %v1081 = vmul.f32 %v1045, 0.10936069
        %v1082 = vmul.f32 %v1046, 0.10936069
        %v1083 = vmul.f32 %v1047, 0.10936069
        %v1087 = vrot.slane %v1081, 3
        %v1088 = vrot.slane %v1082, 3
        %v1089 = vsel %vm430, %v1087, %v1088
        %v1090 = vrot.slane %v1083, 3
        %v1091 = vsel %vm430, %v1088, %v1090
        %v1094 = vadd.f32 %v1079, %v1089
        %v1095 = vadd.f32 %v1080, %v1091
        %v1096 = vmul.f32 %v1045, 0.21300554
        %v1097 = vmul.f32 %v1046, 0.21300554
        %v1098 = vmul.f32 %v1047, 0.21300554
        %v1102 = vrot.slane %v1096, 4
        %v1103 = vrot.slane %v1097, 4
        %v1104 = vsel %vm446, %v1102, %v1103
        %v1105 = vrot.slane %v1098, 4
        %v1106 = vsel %vm446, %v1103, %v1105
        %v1109 = vadd.f32 %v1094, %v1104
        %v1110 = vadd.f32 %v1095, %v1106
        %v1111 = vmul.f32 %v1045, 0.26601171
        %v1112 = vmul.f32 %v1046, 0.26601171
        %v1113 = vmul.f32 %v1047, 0.26601171
        %v1117 = vrot.slane %v1111, 5
        %v1118 = vrot.slane %v1112, 5
        %v1119 = vsel %vm462, %v1117, %v1118
        %v1120 = vrot.slane %v1113, 5
        %v1121 = vsel %vm462, %v1118, %v1120
        %v1124 = vadd.f32 %v1109, %v1119
        %v1125 = vadd.f32 %v1110, %v1121
        %v1126 = vrot.slane %v1096, 6
        %v1127 = vrot.slane %v1097, 6
        %v1128 = vsel %vm472, %v1126, %v1127
        %v1129 = vrot.slane %v1098, 6
        %v1130 = vsel %vm472, %v1127, %v1129
        %v1133 = vadd.f32 %v1124, %v1128
        %v1134 = vadd.f32 %v1125, %v1130
        %v1135 = vrot.slane %v1081, 7
        %v1136 = vrot.slane %v1082, 7
        %v1137 = vsel %vm482, %v1135, %v1136
        %v1138 = vrot.slane %v1083, 7
        %v1139 = vsel %vm482, %v1136, %v1138
        %v1142 = vadd.f32 %v1133, %v1137
        %v1143 = vadd.f32 %v1134, %v1139
        %v1144 = vadd.f32 %v1142, %v1067
        %v1145 = vadd.f32 %v1143, %v1068
        %v1146 = vmul.f32 %v1048, 0.007598758
        %v1148 = vrot.slane %v1146, 1
        %v1149 = vsel %vm398, %v1060, %v1148
        %v1151 = vadd.f32 %v1144, %v1061
        %v1152 = vadd.f32 %v1145, %v1149
        %v1153 = vmul.f32 %v1047, 0.0010283801
        %v1154 = vmul.f32 %v1048, 0.0010283801
        %v1158 = vrot.slane %v1050, 2
        %v1159 = vrot.slane %v1153, 2
        %v1160 = vsel %vm414, %v1158, %v1159
        %v1161 = vrot.slane %v1154, 2
        %v1162 = vsel %vm414, %v1159, %v1161
        %v1165 = vadd.f32 %v1151, %v1160
        %v1166 = vadd.f32 %v1152, %v1162
        %v1167 = vmul.f32 %v174, 0.0010283801
        %v1168 = vmul.f32 %v175, 0.0010283801
        %v1169 = vmul.f32 %v176, 0.0010283801
        %v1170 = vmul.f32 %v177, 0.0010283801
        %v1171 = vmul.f32 %v174, 0.007598758
        %v1172 = vmul.f32 %v175, 0.007598758
        %v1173 = vmul.f32 %v176, 0.007598758
        %v1174 = vmul.f32 %v177, 0.007598758
        %1179 = vrot.lane.b32.xlu0 %v1171, 127
        %v1180 = vpop.permute.xlu0 %1179
        %1181 = vrot.lane.b32.xlu0 %v1172, 127
        %v1182 = vpop.permute.xlu0 %1181
        %1183 = vrot.lane.b32.xlu0 %v1173, 127
        %v1184 = vpop.permute.xlu0 %1183
        %1185 = vrot.lane.b32.xlu0 %v1174, 127
        %v1186 = vpop.permute.xlu0 %1185
        %v1191 = vadd.f32 %v1167, %v1180
        %v1192 = vadd.f32 %v1168, %v1182
        %v1193 = vadd.f32 %v1169, %v1184
        %v1194 = vadd.f32 %v1170, %v1186
        %v1195 = vmul.f32 %v174, 0.036000773
        %v1196 = vmul.f32 %v175, 0.036000773
        %v1197 = vmul.f32 %v176, 0.036000773
        %v1198 = vmul.f32 %v177, 0.036000773
        %1203 = vrot.lane.b32.xlu0 %v1195, 126
        %v1204 = vpop.permute.xlu0 %1203
        %1205 = vrot.lane.b32.xlu0 %v1196, 126
        %v1206 = vpop.permute.xlu0 %1205
        %1207 = vrot.lane.b32.xlu0 %v1197, 126
        %v1208 = vpop.permute.xlu0 %1207
        %1209 = vrot.lane.b32.xlu0 %v1198, 126
        %v1210 = vpop.permute.xlu0 %1209
        %v1215 = vadd.f32 %v1191, %v1204
        %v1216 = vadd.f32 %v1192, %v1206
        %v1217 = vadd.f32 %v1193, %v1208
        %v1218 = vadd.f32 %v1194, %v1210
        %v1219 = vmul.f32 %v174, 0.10936069
        %v1220 = vmul.f32 %v175, 0.10936069
        %v1221 = vmul.f32 %v176, 0.10936069
        %v1222 = vmul.f32 %v177, 0.10936069
        %1227 = vrot.lane.b32.xlu0 %v1219, 125
        %v1228 = vpop.permute.xlu0 %1227
        %1229 = vrot.lane.b32.xlu0 %v1220, 125
        %v1230 = vpop.permute.xlu0 %1229
        %1231 = vrot.lane.b32.xlu0 %v1221, 125
        %v1232 = vpop.permute.xlu0 %1231
        %1233 = vrot.lane.b32.xlu0 %v1222, 125
        %v1234 = vpop.permute.xlu0 %1233
        %v1239 = vadd.f32 %v1215, %v1228
        %v1240 = vadd.f32 %v1216, %v1230
        %v1241 = vadd.f32 %v1217, %v1232
        %v1242 = vadd.f32 %v1218, %v1234
        %v1243 = vmul.f32 %v174, 0.21300554
        %v1244 = vmul.f32 %v175, 0.21300554
        %v1245 = vmul.f32 %v176, 0.21300554
        %v1246 = vmul.f32 %v177, 0.21300554
        %1251 = vrot.lane.b32.xlu0 %v1243, 124
        %v1252 = vpop.permute.xlu0 %1251
        %1253 = vrot.lane.b32.xlu0 %v1244, 124
        %v1254 = vpop.permute.xlu0 %1253
        %1255 = vrot.lane.b32.xlu0 %v1245, 124
        %v1256 = vpop.permute.xlu0 %1255
        %1257 = vrot.lane.b32.xlu0 %v1246, 124
        %v1258 = vpop.permute.xlu0 %1257
        %v1263 = vadd.f32 %v1239, %v1252
        %v1264 = vadd.f32 %v1240, %v1254
        %v1265 = vadd.f32 %v1241, %v1256
        %v1266 = vadd.f32 %v1242, %v1258
        %v1267 = vmul.f32 %v174, 0.26601171
        %v1268 = vmul.f32 %v175, 0.26601171
        %v1269 = vmul.f32 %v176, 0.26601171
        %v1270 = vmul.f32 %v177, 0.26601171
        %1275 = vrot.lane.b32.xlu0 %v1267, 123
        %v1276 = vpop.permute.xlu0 %1275
        %1277 = vrot.lane.b32.xlu0 %v1268, 123
        %v1278 = vpop.permute.xlu0 %1277
        %1279 = vrot.lane.b32.xlu0 %v1269, 123
        %v1280 = vpop.permute.xlu0 %1279
        %1281 = vrot.lane.b32.xlu0 %v1270, 123
        %v1282 = vpop.permute.xlu0 %1281
        %v1287 = vadd.f32 %v1263, %v1276
        %v1288 = vadd.f32 %v1264, %v1278
        %v1289 = vadd.f32 %v1265, %v1280
        %v1290 = vadd.f32 %v1266, %v1282
        %1291 = vrot.lane.b32.xlu0 %v1243, 122
        %v1292 = vpop.permute.xlu0 %1291
        %1293 = vrot.lane.b32.xlu0 %v1244, 122
        %v1294 = vpop.permute.xlu0 %1293
        %1295 = vrot.lane.b32.xlu0 %v1245, 122
        %v1296 = vpop.permute.xlu0 %1295
        %1297 = vrot.lane.b32.xlu0 %v1246, 122
        %v1298 = vpop.permute.xlu0 %1297
        %v1303 = vadd.f32 %v1287, %v1292
        %v1304 = vadd.f32 %v1288, %v1294
        %v1305 = vadd.f32 %v1289, %v1296
        %v1306 = vadd.f32 %v1290, %v1298
        %1307 = vrot.lane.b32.xlu0 %v1219, 121
        %v1308 = vpop.permute.xlu0 %1307
        %1309 = vrot.lane.b32.xlu0 %v1220, 121
        %v1310 = vpop.permute.xlu0 %1309
        %1311 = vrot.lane.b32.xlu0 %v1221, 121
        %v1312 = vpop.permute.xlu0 %1311
        %1313 = vrot.lane.b32.xlu0 %v1222, 121
        %v1314 = vpop.permute.xlu0 %1313
        %v1319 = vadd.f32 %v1303, %v1308
        %v1320 = vadd.f32 %v1304, %v1310
        %v1321 = vadd.f32 %v1305, %v1312
        %v1322 = vadd.f32 %v1306, %v1314
        %1323 = vrot.lane.b32.xlu0 %v1195, 120
        %v1324 = vpop.permute.xlu0 %1323
        %1325 = vrot.lane.b32.xlu0 %v1196, 120
        %v1326 = vpop.permute.xlu0 %1325
        %1327 = vrot.lane.b32.xlu0 %v1197, 120
        %v1328 = vpop.permute.xlu0 %1327
        %1329 = vrot.lane.b32.xlu0 %v1198, 120
        %v1330 = vpop.permute.xlu0 %1329
        %v1335 = vadd.f32 %v1319, %v1324
        %v1336 = vadd.f32 %v1320, %v1326
        %v1337 = vadd.f32 %v1321, %v1328
        %v1338 = vadd.f32 %v1322, %v1330
        %1339 = vrot.lane.b32.xlu0 %v1171, 119
        %v1340 = vpop.permute.xlu0 %1339
        %1341 = vrot.lane.b32.xlu0 %v1172, 119
        %v1342 = vpop.permute.xlu0 %1341
        %1343 = vrot.lane.b32.xlu0 %v1173, 119
        %v1344 = vpop.permute.xlu0 %1343
        %1345 = vrot.lane.b32.xlu0 %v1174, 119
        %v1346 = vpop.permute.xlu0 %1345
        %v1351 = vadd.f32 %v1335, %v1340
        %v1352 = vadd.f32 %v1336, %v1342
        %v1353 = vadd.f32 %v1337, %v1344
        %v1354 = vadd.f32 %v1338, %v1346
        %1359 = vrot.lane.b32.xlu0 %v1167, 118
        %v1360 = vpop.permute.xlu0 %1359
        %1361 = vrot.lane.b32.xlu0 %v1168, 118
        %v1362 = vpop.permute.xlu0 %1361
        %1363 = vrot.lane.b32.xlu0 %v1169, 118
        %v1364 = vpop.permute.xlu0 %1363
        %1365 = vrot.lane.b32.xlu0 %v1170, 118
        %v1366 = vpop.permute.xlu0 %1365
        %v1371 = vadd.f32 %v1351, %v1360
        %v1372 = vadd.f32 %v1352, %v1362
        %v1373 = vadd.f32 %v1353, %v1364
        %v1374 = vadd.f32 %v1354, %v1366
        %v1375 = vmul.f32 %v1371, 0.0010283801
        %v1376 = vmul.f32 %v1372, 0.0010283801
        %v1377 = vmul.f32 %v1371, 0.007598758
        %v1378 = vmul.f32 %v1372, 0.007598758
        %v1379 = vmul.f32 %v1373, 0.007598758
        %v1383 = vrot.slane %v1377, 1
        %v1384 = vrot.slane %v1378, 1
        %v1385 = vsel %vm398, %v1383, %v1384
        %v1386 = vrot.slane %v1379, 1
        %v1387 = vsel %vm398, %v1384, %v1386
        %v1390 = vadd.f32 %v1375, %v1385
        %v1391 = vadd.f32 %v1376, %v1387
        %v1392 = vmul.f32 %v1371, 0.036000773
        %v1393 = vmul.f32 %v1372, 0.036000773
        %v1394 = vmul.f32 %v1373, 0.036000773
        %v1398 = vrot.slane %v1392, 2
        %v1399 = vrot.slane %v1393, 2
        %v1400 = vsel %vm414, %v1398, %v1399
        %v1401 = vrot.slane %v1394, 2
        %v1402 = vsel %vm414, %v1399, %v1401
        %v1405 = vadd.f32 %v1390, %v1400
        %v1406 = vadd.f32 %v1391, %v1402
        %v1407 = vmul.f32 %v1371, 0.10936069
        %v1408 = vmul.f32 %v1372, 0.10936069
        %v1409 = vmul.f32 %v1373, 0.10936069
        %v1413 = vrot.slane %v1407, 3
        %v1414 = vrot.slane %v1408, 3
        %v1415 = vsel %vm430, %v1413, %v1414
        %v1416 = vrot.slane %v1409, 3
        %v1417 = vsel %vm430, %v1414, %v1416
        %v1420 = vadd.f32 %v1405, %v1415
        %v1421 = vadd.f32 %v1406, %v1417
        %v1422 = vmul.f32 %v1371, 0.21300554
        %v1423 = vmul.f32 %v1372, 0.21300554
        %v1424 = vmul.f32 %v1373, 0.21300554
        %v1428 = vrot.slane %v1422, 4
        %v1429 = vrot.slane %v1423, 4
        %v1430 = vsel %vm446, %v1428, %v1429
        %v1431 = vrot.slane %v1424, 4
        %v1432 = vsel %vm446, %v1429, %v1431
        %v1435 = vadd.f32 %v1420, %v1430
        %v1436 = vadd.f32 %v1421, %v1432
        %v1437 = vmul.f32 %v1371, 0.26601171
        %v1438 = vmul.f32 %v1372, 0.26601171
        %v1439 = vmul.f32 %v1373, 0.26601171
        %v1443 = vrot.slane %v1437, 5
        %v1444 = vrot.slane %v1438, 5
        %v1445 = vsel %vm462, %v1443, %v1444
        %v1446 = vrot.slane %v1439, 5
        %v1447 = vsel %vm462, %v1444, %v1446
        %v1450 = vadd.f32 %v1435, %v1445
        %v1451 = vadd.f32 %v1436, %v1447
        %v1452 = vrot.slane %v1422, 6
        %v1453 = vrot.slane %v1423, 6
        %v1454 = vsel %vm472, %v1452, %v1453
        %v1455 = vrot.slane %v1424, 6
        %v1456 = vsel %vm472, %v1453, %v1455
        %v1459 = vadd.f32 %v1450, %v1454
        %v1460 = vadd.f32 %v1451, %v1456
        %v1461 = vrot.slane %v1407, 7
        %v1462 = vrot.slane %v1408, 7
        %v1463 = vsel %vm482, %v1461, %v1462
        %v1464 = vrot.slane %v1409, 7
        %v1465 = vsel %vm482, %v1462, %v1464
        %v1468 = vadd.f32 %v1459, %v1463
        %v1469 = vadd.f32 %v1460, %v1465
        %v1470 = vadd.f32 %v1468, %v1393
        %v1471 = vadd.f32 %v1469, %v1394
        %v1472 = vmul.f32 %v1374, 0.007598758
        %v1474 = vrot.slane %v1472, 1
        %v1475 = vsel %vm398, %v1386, %v1474
        %v1477 = vadd.f32 %v1470, %v1387
        %v1478 = vadd.f32 %v1471, %v1475
        %v1479 = vmul.f32 %v1373, 0.0010283801
        %v1480 = vmul.f32 %v1374, 0.0010283801
        %v1484 = vrot.slane %v1376, 2
        %v1485 = vrot.slane %v1479, 2
        %v1486 = vsel %vm414, %v1484, %v1485
        %v1487 = vrot.slane %v1480, 2
        %v1488 = vsel %vm414, %v1485, %v1487
        %v1491 = vadd.f32 %v1477, %v1486
        %v1492 = vadd.f32 %v1478, %v1488
        %v1493 = vmul.f32 %v178, 0.0010283801
        %v1494 = vmul.f32 %v179, 0.0010283801
        %v1495 = vmul.f32 %v180, 0.0010283801
        %v1496 = vmul.f32 %v181, 0.0010283801
        %v1497 = vmul.f32 %v178, 0.007598758
        %v1498 = vmul.f32 %v179, 0.007598758
        %v1499 = vmul.f32 %v180, 0.007598758
        %v1500 = vmul.f32 %v181, 0.007598758
        %1505 = vrot.lane.b32.xlu0 %v1497, 127
        %v1506 = vpop.permute.xlu0 %1505
        %1507 = vrot.lane.b32.xlu0 %v1498, 127
        %v1508 = vpop.permute.xlu0 %1507
        %1509 = vrot.lane.b32.xlu0 %v1499, 127
        %v1510 = vpop.permute.xlu0 %1509
        %1511 = vrot.lane.b32.xlu0 %v1500, 127
        %v1512 = vpop.permute.xlu0 %1511
        %v1517 = vadd.f32 %v1493, %v1506
        %v1518 = vadd.f32 %v1494, %v1508
        %v1519 = vadd.f32 %v1495, %v1510
        %v1520 = vadd.f32 %v1496, %v1512
        %v1521 = vmul.f32 %v178, 0.036000773
        %v1522 = vmul.f32 %v179, 0.036000773
        %v1523 = vmul.f32 %v180, 0.036000773
        %v1524 = vmul.f32 %v181, 0.036000773
        %1529 = vrot.lane.b32.xlu0 %v1521, 126
        %v1530 = vpop.permute.xlu0 %1529
        %1531 = vrot.lane.b32.xlu0 %v1522, 126
        %v1532 = vpop.permute.xlu0 %1531
        %1533 = vrot.lane.b32.xlu0 %v1523, 126
        %v1534 = vpop.permute.xlu0 %1533
        %1535 = vrot.lane.b32.xlu0 %v1524, 126
        %v1536 = vpop.permute.xlu0 %1535
        %v1541 = vadd.f32 %v1517, %v1530
        %v1542 = vadd.f32 %v1518, %v1532
        %v1543 = vadd.f32 %v1519, %v1534
        %v1544 = vadd.f32 %v1520, %v1536
        %v1545 = vmul.f32 %v178, 0.10936069
        %v1546 = vmul.f32 %v179, 0.10936069
        %v1547 = vmul.f32 %v180, 0.10936069
        %v1548 = vmul.f32 %v181, 0.10936069
        %1553 = vrot.lane.b32.xlu0 %v1545, 125
        %v1554 = vpop.permute.xlu0 %1553
        %1555 = vrot.lane.b32.xlu0 %v1546, 125
        %v1556 = vpop.permute.xlu0 %1555
        %1557 = vrot.lane.b32.xlu0 %v1547, 125
        %v1558 = vpop.permute.xlu0 %1557
        %1559 = vrot.lane.b32.xlu0 %v1548, 125
        %v1560 = vpop.permute.xlu0 %1559
        %v1565 = vadd.f32 %v1541, %v1554
        %v1566 = vadd.f32 %v1542, %v1556
        %v1567 = vadd.f32 %v1543, %v1558
        %v1568 = vadd.f32 %v1544, %v1560
        %v1569 = vmul.f32 %v178, 0.21300554
        %v1570 = vmul.f32 %v179, 0.21300554
        %v1571 = vmul.f32 %v180, 0.21300554
        %v1572 = vmul.f32 %v181, 0.21300554
        %1577 = vrot.lane.b32.xlu0 %v1569, 124
        %v1578 = vpop.permute.xlu0 %1577
        %1579 = vrot.lane.b32.xlu0 %v1570, 124
        %v1580 = vpop.permute.xlu0 %1579
        %1581 = vrot.lane.b32.xlu0 %v1571, 124
        %v1582 = vpop.permute.xlu0 %1581
        %1583 = vrot.lane.b32.xlu0 %v1572, 124
        %v1584 = vpop.permute.xlu0 %1583
        %v1589 = vadd.f32 %v1565, %v1578
        %v1590 = vadd.f32 %v1566, %v1580
        %v1591 = vadd.f32 %v1567, %v1582
        %v1592 = vadd.f32 %v1568, %v1584
        %v1593 = vmul.f32 %v178, 0.26601171
        %v1594 = vmul.f32 %v179, 0.26601171
        %v1595 = vmul.f32 %v180, 0.26601171
        %v1596 = vmul.f32 %v181, 0.26601171
        %1601 = vrot.lane.b32.xlu0 %v1593, 123
        %v1602 = vpop.permute.xlu0 %1601
        %1603 = vrot.lane.b32.xlu0 %v1594, 123
        %v1604 = vpop.permute.xlu0 %1603
        %1605 = vrot.lane.b32.xlu0 %v1595, 123
        %v1606 = vpop.permute.xlu0 %1605
        %1607 = vrot.lane.b32.xlu0 %v1596, 123
        %v1608 = vpop.permute.xlu0 %1607
        %v1613 = vadd.f32 %v1589, %v1602
        %v1614 = vadd.f32 %v1590, %v1604
        %v1615 = vadd.f32 %v1591, %v1606
        %v1616 = vadd.f32 %v1592, %v1608
        %1617 = vrot.lane.b32.xlu0 %v1569, 122
        %v1618 = vpop.permute.xlu0 %1617
        %1619 = vrot.lane.b32.xlu0 %v1570, 122
        %v1620 = vpop.permute.xlu0 %1619
        %1621 = vrot.lane.b32.xlu0 %v1571, 122
        %v1622 = vpop.permute.xlu0 %1621
        %1623 = vrot.lane.b32.xlu0 %v1572, 122
        %v1624 = vpop.permute.xlu0 %1623
        %v1629 = vadd.f32 %v1613, %v1618
        %v1630 = vadd.f32 %v1614, %v1620
        %v1631 = vadd.f32 %v1615, %v1622
        %v1632 = vadd.f32 %v1616, %v1624
        %1633 = vrot.lane.b32.xlu0 %v1545, 121
        %v1634 = vpop.permute.xlu0 %1633
        %1635 = vrot.lane.b32.xlu0 %v1546, 121
        %v1636 = vpop.permute.xlu0 %1635
        %1637 = vrot.lane.b32.xlu0 %v1547, 121
        %v1638 = vpop.permute.xlu0 %1637
        %1639 = vrot.lane.b32.xlu0 %v1548, 121
        %v1640 = vpop.permute.xlu0 %1639
        %v1645 = vadd.f32 %v1629, %v1634
        %v1646 = vadd.f32 %v1630, %v1636
        %v1647 = vadd.f32 %v1631, %v1638
        %v1648 = vadd.f32 %v1632, %v1640
        %1649 = vrot.lane.b32.xlu0 %v1521, 120
        %v1650 = vpop.permute.xlu0 %1649
        %1651 = vrot.lane.b32.xlu0 %v1522, 120
        %v1652 = vpop.permute.xlu0 %1651
        %1653 = vrot.lane.b32.xlu0 %v1523, 120
        %v1654 = vpop.permute.xlu0 %1653
        %1655 = vrot.lane.b32.xlu0 %v1524, 120
        %v1656 = vpop.permute.xlu0 %1655
        %v1661 = vadd.f32 %v1645, %v1650
        %v1662 = vadd.f32 %v1646, %v1652
        %v1663 = vadd.f32 %v1647, %v1654
        %v1664 = vadd.f32 %v1648, %v1656
        %1665 = vrot.lane.b32.xlu0 %v1497, 119
        %v1666 = vpop.permute.xlu0 %1665
        %1667 = vrot.lane.b32.xlu0 %v1498, 119
        %v1668 = vpop.permute.xlu0 %1667
        %1669 = vrot.lane.b32.xlu0 %v1499, 119
        %v1670 = vpop.permute.xlu0 %1669
        %1671 = vrot.lane.b32.xlu0 %v1500, 119
        %v1672 = vpop.permute.xlu0 %1671
        %v1677 = vadd.f32 %v1661, %v1666
        %v1678 = vadd.f32 %v1662, %v1668
        %v1679 = vadd.f32 %v1663, %v1670
        %v1680 = vadd.f32 %v1664, %v1672
        %1685 = vrot.lane.b32.xlu0 %v1493, 118
        %v1686 = vpop.permute.xlu0 %1685
        %1687 = vrot.lane.b32.xlu0 %v1494, 118
        %v1688 = vpop.permute.xlu0 %1687
        %1689 = vrot.lane.b32.xlu0 %v1495, 118
        %v1690 = vpop.permute.xlu0 %1689
        %1691 = vrot.lane.b32.xlu0 %v1496, 118
        %v1692 = vpop.permute.xlu0 %1691
        %v1697 = vadd.f32 %v1677, %v1686
        %v1698 = vadd.f32 %v1678, %v1688
        %v1699 = vadd.f32 %v1679, %v1690
        %v1700 = vadd.f32 %v1680, %v1692
        %v1701 = vmul.f32 %v1697, 0.0010283801
        %v1702 = vmul.f32 %v1698, 0.0010283801
        %v1703 = vmul.f32 %v1697, 0.007598758
        %v1704 = vmul.f32 %v1698, 0.007598758
        %v1705 = vmul.f32 %v1699, 0.007598758
        %v1709 = vrot.slane %v1703, 1
        %v1710 = vrot.slane %v1704, 1
        %v1711 = vsel %vm398, %v1709, %v1710
        %v1712 = vrot.slane %v1705, 1
        %v1713 = vsel %vm398, %v1710, %v1712
        %v1716 = vadd.f32 %v1701, %v1711
        %v1717 = vadd.f32 %v1702, %v1713
        %v1718 = vmul.f32 %v1697, 0.036000773
        %v1719 = vmul.f32 %v1698, 0.036000773
        %v1720 = vmul.f32 %v1699, 0.036000773
        %v1724 = vrot.slane %v1718, 2
        %v1725 = vrot.slane %v1719, 2
        %v1726 = vsel %vm414, %v1724, %v1725
        %v1727 = vrot.slane %v1720, 2
        %v1728 = vsel %vm414, %v1725, %v1727
        %v1731 = vadd.f32 %v1716, %v1726
        %v1732 = vadd.f32 %v1717, %v1728
        %v1733 = vmul.f32 %v1697, 0.10936069
        %v1734 = vmul.f32 %v1698, 0.10936069
        %v1735 = vmul.f32 %v1699, 0.10936069
        %v1739 = vrot.slane %v1733, 3
        %v1740 = vrot.slane %v1734, 3
        %v1741 = vsel %vm430, %v1739, %v1740
        %v1742 = vrot.slane %v1735, 3
        %v1743 = vsel %vm430, %v1740, %v1742
        %v1746 = vadd.f32 %v1731, %v1741
        %v1747 = vadd.f32 %v1732, %v1743
        %v1748 = vmul.f32 %v1697, 0.21300554
        %v1749 = vmul.f32 %v1698, 0.21300554
        %v1750 = vmul.f32 %v1699, 0.21300554
        %v1754 = vrot.slane %v1748, 4
        %v1755 = vrot.slane %v1749, 4
        %v1756 = vsel %vm446, %v1754, %v1755
        %v1757 = vrot.slane %v1750, 4
        %v1758 = vsel %vm446, %v1755, %v1757
        %v1761 = vadd.f32 %v1746, %v1756
        %v1762 = vadd.f32 %v1747, %v1758
        %v1763 = vmul.f32 %v1697, 0.26601171
        %v1764 = vmul.f32 %v1698, 0.26601171
        %v1765 = vmul.f32 %v1699, 0.26601171
        %v1769 = vrot.slane %v1763, 5
        %v1770 = vrot.slane %v1764, 5
        %v1771 = vsel %vm462, %v1769, %v1770
        %v1772 = vrot.slane %v1765, 5
        %v1773 = vsel %vm462, %v1770, %v1772
        %v1776 = vadd.f32 %v1761, %v1771
        %v1777 = vadd.f32 %v1762, %v1773
        %v1778 = vrot.slane %v1748, 6
        %v1779 = vrot.slane %v1749, 6
        %v1780 = vsel %vm472, %v1778, %v1779
        %v1781 = vrot.slane %v1750, 6
        %v1782 = vsel %vm472, %v1779, %v1781
        %v1785 = vadd.f32 %v1776, %v1780
        %v1786 = vadd.f32 %v1777, %v1782
        %v1787 = vrot.slane %v1733, 7
        %v1788 = vrot.slane %v1734, 7
        %v1789 = vsel %vm482, %v1787, %v1788
        %v1790 = vrot.slane %v1735, 7
        %v1791 = vsel %vm482, %v1788, %v1790
        %v1794 = vadd.f32 %v1785, %v1789
        %v1795 = vadd.f32 %v1786, %v1791
        %v1796 = vadd.f32 %v1794, %v1719
        %v1797 = vadd.f32 %v1795, %v1720
        %v1798 = vmul.f32 %v1700, 0.007598758
        %v1800 = vrot.slane %v1798, 1
        %v1801 = vsel %vm398, %v1712, %v1800
        %v1803 = vadd.f32 %v1796, %v1713
        %v1804 = vadd.f32 %v1797, %v1801
        %v1805 = vmul.f32 %v1699, 0.0010283801
        %v1806 = vmul.f32 %v1700, 0.0010283801
        %v1810 = vrot.slane %v1702, 2
        %v1811 = vrot.slane %v1805, 2
        %v1812 = vsel %vm414, %v1810, %v1811
        %v1813 = vrot.slane %v1806, 2
        %v1814 = vsel %vm414, %v1811, %v1813
        %v1817 = vadd.f32 %v1803, %v1812
        %v1818 = vadd.f32 %v1804, %v1814
        %v1819 = vmul.f32 %v513, %v513
        %v1820 = vmul.f32 %v514, %v514
        %v1821 = vmul.f32 %v839, %v839
        %v1822 = vmul.f32 %v840, %v840
        %v1823 = vmul.f32 %v513, %v839
        %v1824 = vmul.f32 %v514, %v840
        %v1825 = vsub.f32 %v1165, %v1819
        %v1826 = vsub.f32 %v1166, %v1820
        %v1827 = vsub.f32 %v1491, %v1821
        %v1828 = vsub.f32 %v1492, %v1822
        %v1829 = vsub.f32 %v1817, %v1823
        %v1830 = vsub.f32 %v1818, %v1824
        %v1831 = vmul.f32 %v1823, 2.0
        %v1832 = vmul.f32 %v1824, 2.0
        %v1833 = vadd.f32 %v1831, 0.0001
        %v1834 = vadd.f32 %v1832, 0.0001
        %v1835 = vmul.f32 %v1829, 2.0
        %v1836 = vmul.f32 %v1830, 2.0
        %v1837 = vadd.f32 %v1835, 0.0009
        %v1838 = vadd.f32 %v1836, 0.0009
        %v1839 = vmul.f32 %v1833, %v1837
        %v1840 = vmul.f32 %v1834, %v1838
        %v1841 = vadd.f32 %v1819, %v1821
        %v1842 = vadd.f32 %v1820, %v1822
        %v1843 = vadd.f32 %v1841, 0.0001
        %v1844 = vadd.f32 %v1842, 0.0001
        %v1845 = vadd.f32 %v1825, %v1827
        %v1846 = vadd.f32 %v1826, %v1828
        %v1847 = vadd.f32 %v1845, 0.0009
        %v1848 = vadd.f32 %v1846, 0.0009
        %v1849 = vmul.f32 %v1843, %v1847
        %v1850 = vmul.f32 %v1844, %v1848
        %v1851 = vrcp.pop %v1849
        %v1852 = vrcp.pop %v1850
        %v1853 = vmul.f32 %v1839, %v1851
        %v1854 = vmul.f32 %v1840, %v1852
        %vm1855 = vcmask 130048
        %v1856 = vsel %vm1855, %v1853, 0.0
        %v1857 = vsel %vm1855, %v1854, 0.0
        %v1858 = vadd.f32 %v1856, %v1857
        %1859 = vadd.xlane.f32.xlu0 %v1858
        %v1860 = vpop.xlane.xlu0 %1859
        %v1861 = vrot.slane %v1860, 4
        %v1862 = vadd.f32 %v1860, %v1861
        %v1863 = vrot.slane %v1862, 2
        %v1864 = vadd.f32 %v1862, %v1863
        %v1865 = vrot.slane %v1864, 1
        %v1866 = vadd.f32 %v1864, %v1865
        %s1867 = vtos %v1866
        %s1868 = smul.f32 %s1867, 0.00390625
        %v1869 = vstv %s1868
        %1870 = vst [vmem:[%s151] sm:$0xff] %v1869
        %s1871 = sand.u32 %s76, 1
        %s1872 = scalar_lea.sflag [#allocation3], %s1871
        %s1873 = sand.u32 %s76, 1
        %s1874 = smul.addr %s1873, 8
        %s1875 = scalar_lea.vmem [#allocation2], %s1874
        // Predicated region
        $region29: #{tpu_custom_call.1} parent=27 // pred_check
          %p1876 = pneg %p86
        $region30: #{tpu_custom_call.1} parent=27 // pred_check_branch
          %1878 = sbr.rel (%p1876) target = $region32
        $region31: #{tpu_custom_call.1} parent=27 // pred_region
          %s1880 = ssub.s32 128, 128
          %1881 = vsyncadd %s1872, %s1880
          %s1882 = smul.addr %s16, 128
          %s1883 = scalar_lea.hbm %s2, %s1882
          %s1885 = sshll.u32 %s1875, 4
          %s1886 = int_to_ptr.vmem [resolvable:$true] %s1885
          %1888 = dma.vmem_to_hbm [thread:$0]  %s1886, 128, %s1883, %s1872
        $region32: #{tpu_custom_call.1} parent=27 // pred_fallthru
          _
      $region28: #{tpu_custom_call.1} parent=5 // pred_fallthru
        _
      %p1889 = scmp.le.s32.totalorder 2, %s11
      // Predicated region
      $region33: #{tpu_custom_call.1} parent=5 // pred_check
        %p1890 = pneg %p1889
      $region34: #{tpu_custom_call.1} parent=5 // pred_check_branch
        %1892 = sbr.rel (%p1890) target = $region36
      $region35: #{tpu_custom_call.1} parent=5 // pred_region
        %s1893 = ssub.s32 %s11, 2
        // Predicated region
        $region37: #{tpu_custom_call.1} parent=35 // pred_check
          %p1894 = pneg %p92
        $region38: #{tpu_custom_call.1} parent=35 // pred_check_branch
          %1896 = sbr.rel (%p1894) target = $region40
        $region39: #{tpu_custom_call.1} parent=35 // pred_region
          %s1897 = sand.u32 %s77, 1
          %s1898 = scalar_lea.sflag [#allocation3], %s1897
          %s1899 = sand.u32 %s77, 1
          %s1900 = smul.addr %s1899, 8
          %s1901 = scalar_lea.vmem [#allocation2], %s1900
          %1902 = dma.done %s1898, 128
        $region40: #{tpu_custom_call.1} parent=35 // pred_fallthru
          _
      $region36: #{tpu_custom_call.1} parent=5 // pred_fallthru
        _
    $region6: #{tpu_custom_call.1} parent=1 // loop_footer
      %s15 = sadd.s32 1, %s11
    $region7: #{tpu_custom_call.1} parent=1 // loop_footer_branch
      %10 = sbr.rel target = $region3
    $region8: #{tpu_custom_call.1} parent=1 // loop_exit
      _
    %1903 = vsyncpa [#allocation3], 1
    %s1904 = scalar_lea.sflag [#allocation3], 1
    %1905 = vsyncpa %s1904, 1

</llo_original>
